<compile_context>
chip_gen: v7x
topology: tpu7x:2x2x1
jax: 0.10.0
libtpu: 0.0.40
codegen_flags: <defaults>
</compile_context>

<pallas_src>
import functools

import jax
import jax.numpy as jnp
from jax import lax
from jax.experimental import pallas as pl
from jax.experimental.pallas import tpu as pltpu


def _char_gather_kernel(idx_ref,      # SMEM scalar-prefetch: (n_pad,) int32 indices
                        emb_hbm,      # (V, D) embedding table, memory_space=pl.ANY (HBM)
                        out_ref,      # (tb, D) VMEM output tile
                        row_buf,      # (tb, D) VMEM scratch (DMA landing buffer)
                        copy_sems):   # (tb,) DMA semaphores
    i = pl.program_id(0)
    tb = out_ref.shape[0]
    base = i * tb

    # Phase 1: issue all tb row gathers (one small rectangular DMA per lookup).
    def _start(j, carry):
        row = idx_ref[base + j]
        pltpu.make_async_copy(
            emb_hbm.at[pl.ds(row, 1), :],
            row_buf.at[pl.ds(j, 1), :],
            copy_sems.at[j],
        ).start()
        return carry

    lax.fori_loop(0, tb, _start, 0, unroll=True)

    # Phase 2: wait for all of them (dummy src slice of matching size for the wait).
    def _wait(j, carry):
        pltpu.make_async_copy(
            emb_hbm.at[pl.ds(0, 1), :],
            row_buf.at[pl.ds(j, 1), :],
            copy_sems.at[j],
        ).wait()
        return carry

    lax.fori_loop(0, tb, _wait, 0, unroll=True)

    # TODO(synk): nn.Dropout in training mode omitted (eval-mode identity; no RNG
    # state plumbed into the kernel).
    out_ref[...] = row_buf[...]


@functools.partial(jax.jit, static_argnames=("tb",))
def char_embeddings_forward(emb_table, words_seq, *, tb=16):
    """Forward of CharEmbeddings: out[..., :] = emb_table[words_seq[...]] (eval mode).

    emb_table: (vocab_size, embed_dim) float32, row 0 is the padding_idx row.
    words_seq: integer array of arbitrary shape (e.g. (B, W, L) char ids).
    Returns:   (*words_seq.shape, embed_dim) float32.
    """
    V, D = emb_table.shape
    orig_shape = words_seq.shape

    idx_flat = words_seq.reshape(-1).astype(jnp.int32)
    n = idx_flat.shape[0]
    n_pad = pl.cdiv(n, tb) * tb
    # Pad with 0 == padding_idx: in-range, reads the (zero) padding row, discarded below.
    idx_pad = jnp.pad(idx_flat, (0, n_pad - n))

    grid = (n_pad // tb,)

    out = pl.pallas_call(
        _char_gather_kernel,
        out_shape=jax.ShapeDtypeStruct((n_pad, D), emb_table.dtype),
        grid_spec=pltpu.PrefetchScalarGridSpec(
            num_scalar_prefetch=1,                 # idx_pad -> SMEM, no XLA gather
            grid=grid,
            in_specs=[
                pl.BlockSpec(memory_space=pl.ANY),  # embedding table stays in HBM
            ],
            out_specs=pl.BlockSpec((tb, D), lambda i, idx: (i, 0)),  # lane-dense tile
            scratch_shapes=[
                pltpu.VMEM((tb, D), emb_table.dtype),
                pltpu.SemaphoreType.DMA((tb,)),
            ],
        ),
        compiler_params=pltpu.CompilerParams(
            dimension_semantics=("arbitrary",)),
    )(idx_pad, emb_table)

    return out[:n].reshape(*orig_shape, D)


def _reference_forward(emb_table, words_seq):
    """Plain-JAX reference mirroring the PyTorch forward (eval mode)."""
    return emb_table[words_seq]


if __name__ == "__main__":
    # Small shapes consistent with the module.
    vocab_size = 64
    embed_dim = 32
    drop_out_rate = 0.5          # unused at eval time (identity)
    B, W, L = 2, 3, 8            # batch, words per sample, chars per word

    key = jax.random.PRNGKey(0)
    k_emb, k_idx = jax.random.split(key, 2)

    emb_table = jax.random.normal(k_emb, (vocab_size, embed_dim), jnp.float32)
    # nn.Embedding(padding_idx=0): row 0 is zeros.
    emb_table = emb_table.at[0].set(0.0)

    words_seq = jax.random.randint(k_idx, (B, W, L), 0, vocab_size).astype(jnp.int32)
    # Sprinkle in some explicit padding chars (index 0).
    words_seq = words_seq.at[:, :, -2:].set(0)

    out = char_embeddings_forward(emb_table, words_seq, tb=16)
    out = jax.block_until_ready(out)

    ref = _reference_forward(emb_table, words_seq)
    assert out.shape == (B, W, L, embed_dim), out.shape
    assert jnp.allclose(out, ref, atol=1e-6, rtol=1e-6)
    # Padding rows must be exactly zero.
    assert jnp.all(out[:, :, -2:, :] == 0.0)
    print("KERNEL_OK")
</pallas_src>

<mosaic_0001>
module attributes {stable_mosaic.version = 11 : i64} {
  func.func @_char_gather_kernel(%arg0: i32, %arg1: memref<48xi32, #tpu.memory_space<smem>>, %arg2: memref<64x32xf32, #tpu.memory_space<any>>, %arg3: memref<16x32xf32, #tpu.memory_space<vmem>>, %arg4: memref<16x32xf32, #tpu.memory_space<vmem>>, %arg5: memref<16x!tpu.dma_semaphore, #tpu.memory_space<semaphore_mem>>) attributes {dimension_semantics = [#tpu.dimension_semantics<arbitrary>], iteration_bounds = array<i64: 3>, scalar_prefetch = 1 : i64, scratch_operands = 2 : i64, tpu.core_type = #tpu.core_type<tc>, window_params = [{}, {transform_indices = @transform_1, window_bounds = array<i64: 16, 32>}]} {
    %c16_i32 = arith.constant 16 : i32
    %0 = arith.muli %arg0, %c16_i32 : i32
    %c0_i32 = arith.constant 0 : i32
    %1 = arith.addi %0, %c0_i32 : i32
    %2 = arith.index_cast %1 : i32 to index
    %3 = memref.load %arg1[%2] : memref<48xi32, #tpu.memory_space<smem>>
    %c0_i32_0 = arith.constant 0 : i32
    %4 = tpu.memref_slice %arg2[%3, %c0_i32_0] : memref<64x32xf32, #tpu.memory_space<any>> -> memref<1x32xf32, #tpu.memory_space<any>>
    %c0_i32_1 = arith.constant 0 : i32
    %5 = tpu.memref_slice %arg4[%c0_i32, %c0_i32_1] : memref<16x32xf32, #tpu.memory_space<vmem>> -> memref<1x32xf32, #tpu.memory_space<vmem>>
    %6 = tpu.memref_slice %arg5[%c0_i32] : memref<16x!tpu.dma_semaphore, #tpu.memory_space<semaphore_mem>> -> memref<1x!tpu.dma_semaphore, #tpu.memory_space<semaphore_mem>>
    %7 = tpu.memref_squeeze %6 : memref<1x!tpu.dma_semaphore, #tpu.memory_space<semaphore_mem>> -> memref<!tpu.dma_semaphore, #tpu.memory_space<semaphore_mem>>
    tpu.enqueue_dma source(%4 : memref<1x32xf32, #tpu.memory_space<any>>) target(%5 : memref<1x32xf32, #tpu.memory_space<vmem>>) target_semaphore(%7 : memref<!tpu.dma_semaphore, #tpu.memory_space<semaphore_mem>>)
    %c1_i32 = arith.constant 1 : i32
    %8 = arith.addi %0, %c1_i32 : i32
    %9 = arith.index_cast %8 : i32 to index
    %10 = memref.load %arg1[%9] : memref<48xi32, #tpu.memory_space<smem>>
    %c0_i32_2 = arith.constant 0 : i32
    %11 = tpu.memref_slice %arg2[%10, %c0_i32_2] : memref<64x32xf32, #tpu.memory_space<any>> -> memref<1x32xf32, #tpu.memory_space<any>>
    %c0_i32_3 = arith.constant 0 : i32
    %12 = tpu.memref_slice %arg4[%c1_i32, %c0_i32_3] : memref<16x32xf32, #tpu.memory_space<vmem>> -> memref<1x32xf32, #tpu.memory_space<vmem>>
    %13 = tpu.memref_slice %arg5[%c1_i32] : memref<16x!tpu.dma_semaphore, #tpu.memory_space<semaphore_mem>> -> memref<1x!tpu.dma_semaphore, #tpu.memory_space<semaphore_mem>>
    %14 = tpu.memref_squeeze %13 : memref<1x!tpu.dma_semaphore, #tpu.memory_space<semaphore_mem>> -> memref<!tpu.dma_semaphore, #tpu.memory_space<semaphore_mem>>
    tpu.enqueue_dma source(%11 : memref<1x32xf32, #tpu.memory_space<any>>) target(%12 : memref<1x32xf32, #tpu.memory_space<vmem>>) target_semaphore(%14 : memref<!tpu.dma_semaphore, #tpu.memory_space<semaphore_mem>>)
    %c2_i32 = arith.constant 2 : i32
    %15 = arith.addi %0, %c2_i32 : i32
    %16 = arith.index_cast %15 : i32 to index
    %17 = memref.load %arg1[%16] : memref<48xi32, #tpu.memory_space<smem>>
    %c0_i32_4 = arith.constant 0 : i32
    %18 = tpu.memref_slice %arg2[%17, %c0_i32_4] : memref<64x32xf32, #tpu.memory_space<any>> -> memref<1x32xf32, #tpu.memory_space<any>>
    %c0_i32_5 = arith.constant 0 : i32
    %19 = tpu.memref_slice %arg4[%c2_i32, %c0_i32_5] : memref<16x32xf32, #tpu.memory_space<vmem>> -> memref<1x32xf32, #tpu.memory_space<vmem>>
    %20 = tpu.memref_slice %arg5[%c2_i32] : memref<16x!tpu.dma_semaphore, #tpu.memory_space<semaphore_mem>> -> memref<1x!tpu.dma_semaphore, #tpu.memory_space<semaphore_mem>>
    %21 = tpu.memref_squeeze %20 : memref<1x!tpu.dma_semaphore, #tpu.memory_space<semaphore_mem>> -> memref<!tpu.dma_semaphore, #tpu.memory_space<semaphore_mem>>
    tpu.enqueue_dma source(%18 : memref<1x32xf32, #tpu.memory_space<any>>) target(%19 : memref<1x32xf32, #tpu.memory_space<vmem>>) target_semaphore(%21 : memref<!tpu.dma_semaphore, #tpu.memory_space<semaphore_mem>>)
    %c3_i32 = arith.constant 3 : i32
    %22 = arith.addi %0, %c3_i32 : i32
    %23 = arith.index_cast %22 : i32 to index
    %24 = memref.load %arg1[%23] : memref<48xi32, #tpu.memory_space<smem>>
    %c0_i32_6 = arith.constant 0 : i32
    %25 = tpu.memref_slice %arg2[%24, %c0_i32_6] : memref<64x32xf32, #tpu.memory_space<any>> -> memref<1x32xf32, #tpu.memory_space<any>>
    %c0_i32_7 = arith.constant 0 : i32
    %26 = tpu.memref_slice %arg4[%c3_i32, %c0_i32_7] : memref<16x32xf32, #tpu.memory_space<vmem>> -> memref<1x32xf32, #tpu.memory_space<vmem>>
    %27 = tpu.memref_slice %arg5[%c3_i32] : memref<16x!tpu.dma_semaphore, #tpu.memory_space<semaphore_mem>> -> memref<1x!tpu.dma_semaphore, #tpu.memory_space<semaphore_mem>>
    %28 = tpu.memref_squeeze %27 : memref<1x!tpu.dma_semaphore, #tpu.memory_space<semaphore_mem>> -> memref<!tpu.dma_semaphore, #tpu.memory_space<semaphore_mem>>
    tpu.enqueue_dma source(%25 : memref<1x32xf32, #tpu.memory_space<any>>) target(%26 : memref<1x32xf32, #tpu.memory_space<vmem>>) target_semaphore(%28 : memref<!tpu.dma_semaphore, #tpu.memory_space<semaphore_mem>>)
    %c4_i32 = arith.constant 4 : i32
    %29 = arith.addi %0, %c4_i32 : i32
    %30 = arith.index_cast %29 : i32 to index
    %31 = memref.load %arg1[%30] : memref<48xi32, #tpu.memory_space<smem>>
    %c0_i32_8 = arith.constant 0 : i32
    %32 = tpu.memref_slice %arg2[%31, %c0_i32_8] : memref<64x32xf32, #tpu.memory_space<any>> -> memref<1x32xf32, #tpu.memory_space<any>>
    %c0_i32_9 = arith.constant 0 : i32
    %33 = tpu.memref_slice %arg4[%c4_i32, %c0_i32_9] : memref<16x32xf32, #tpu.memory_space<vmem>> -> memref<1x32xf32, #tpu.memory_space<vmem>>
    %34 = tpu.memref_slice %arg5[%c4_i32] : memref<16x!tpu.dma_semaphore, #tpu.memory_space<semaphore_mem>> -> memref<1x!tpu.dma_semaphore, #tpu.memory_space<semaphore_mem>>
    %35 = tpu.memref_squeeze %34 : memref<1x!tpu.dma_semaphore, #tpu.memory_space<semaphore_mem>> -> memref<!tpu.dma_semaphore, #tpu.memory_space<semaphore_mem>>
    tpu.enqueue_dma source(%32 : memref<1x32xf32, #tpu.memory_space<any>>) target(%33 : memref<1x32xf32, #tpu.memory_space<vmem>>) target_semaphore(%35 : memref<!tpu.dma_semaphore, #tpu.memory_space<semaphore_mem>>)
    %c5_i32 = arith.constant 5 : i32
    %36 = arith.addi %0, %c5_i32 : i32
    %37 = arith.index_cast %36 : i32 to index
    %38 = memref.load %arg1[%37] : memref<48xi32, #tpu.memory_space<smem>>
    %c0_i32_10 = arith.constant 0 : i32
    %39 = tpu.memref_slice %arg2[%38, %c0_i32_10] : memref<64x32xf32, #tpu.memory_space<any>> -> memref<1x32xf32, #tpu.memory_space<any>>
    %c0_i32_11 = arith.constant 0 : i32
    %40 = tpu.memref_slice %arg4[%c5_i32, %c0_i32_11] : memref<16x32xf32, #tpu.memory_space<vmem>> -> memref<1x32xf32, #tpu.memory_space<vmem>>
    %41 = tpu.memref_slice %arg5[%c5_i32] : memref<16x!tpu.dma_semaphore, #tpu.memory_space<semaphore_mem>> -> memref<1x!tpu.dma_semaphore, #tpu.memory_space<semaphore_mem>>
    %42 = tpu.memref_squeeze %41 : memref<1x!tpu.dma_semaphore, #tpu.memory_space<semaphore_mem>> -> memref<!tpu.dma_semaphore, #tpu.memory_space<semaphore_mem>>
    tpu.enqueue_dma source(%39 : memref<1x32xf32, #tpu.memory_space<any>>) target(%40 : memref<1x32xf32, #tpu.memory_space<vmem>>) target_semaphore(%42 : memref<!tpu.dma_semaphore, #tpu.memory_space<semaphore_mem>>)
    %c6_i32 = arith.constant 6 : i32
    %43 = arith.addi %0, %c6_i32 : i32
    %44 = arith.index_cast %43 : i32 to index
    %45 = memref.load %arg1[%44] : memref<48xi32, #tpu.memory_space<smem>>
    %c0_i32_12 = arith.constant 0 : i32
    %46 = tpu.memref_slice %arg2[%45, %c0_i32_12] : memref<64x32xf32, #tpu.memory_space<any>> -> memref<1x32xf32, #tpu.memory_space<any>>
    %c0_i32_13 = arith.constant 0 : i32
    %47 = tpu.memref_slice %arg4[%c6_i32, %c0_i32_13] : memref<16x32xf32, #tpu.memory_space<vmem>> -> memref<1x32xf32, #tpu.memory_space<vmem>>
    %48 = tpu.memref_slice %arg5[%c6_i32] : memref<16x!tpu.dma_semaphore, #tpu.memory_space<semaphore_mem>> -> memref<1x!tpu.dma_semaphore, #tpu.memory_space<semaphore_mem>>
    %49 = tpu.memref_squeeze %48 : memref<1x!tpu.dma_semaphore, #tpu.memory_space<semaphore_mem>> -> memref<!tpu.dma_semaphore, #tpu.memory_space<semaphore_mem>>
    tpu.enqueue_dma source(%46 : memref<1x32xf32, #tpu.memory_space<any>>) target(%47 : memref<1x32xf32, #tpu.memory_space<vmem>>) target_semaphore(%49 : memref<!tpu.dma_semaphore, #tpu.memory_space<semaphore_mem>>)
    %c7_i32 = arith.constant 7 : i32
    %50 = arith.addi %0, %c7_i32 : i32
    %51 = arith.index_cast %50 : i32 to index
    %52 = memref.load %arg1[%51] : memref<48xi32, #tpu.memory_space<smem>>
    %c0_i32_14 = arith.constant 0 : i32
    %53 = tpu.memref_slice %arg2[%52, %c0_i32_14] : memref<64x32xf32, #tpu.memory_space<any>> -> memref<1x32xf32, #tpu.memory_space<any>>
    %c0_i32_15 = arith.constant 0 : i32
    %54 = tpu.memref_slice %arg4[%c7_i32, %c0_i32_15] : memref<16x32xf32, #tpu.memory_space<vmem>> -> memref<1x32xf32, #tpu.memory_space<vmem>>
    %55 = tpu.memref_slice %arg5[%c7_i32] : memref<16x!tpu.dma_semaphore, #tpu.memory_space<semaphore_mem>> -> memref<1x!tpu.dma_semaphore, #tpu.memory_space<semaphore_mem>>
    %56 = tpu.memref_squeeze %55 : memref<1x!tpu.dma_semaphore, #tpu.memory_space<semaphore_mem>> -> memref<!tpu.dma_semaphore, #tpu.memory_space<semaphore_mem>>
    tpu.enqueue_dma source(%53 : memref<1x32xf32, #tpu.memory_space<any>>) target(%54 : memref<1x32xf32, #tpu.memory_space<vmem>>) target_semaphore(%56 : memref<!tpu.dma_semaphore, #tpu.memory_space<semaphore_mem>>)
    %c8_i32 = arith.constant 8 : i32
    %57 = arith.addi %0, %c8_i32 : i32
    %58 = arith.index_cast %57 : i32 to index
    %59 = memref.load %arg1[%58] : memref<48xi32, #tpu.memory_space<smem>>
    %c0_i32_16 = arith.constant 0 : i32
    %60 = tpu.memref_slice %arg2[%59, %c0_i32_16] : memref<64x32xf32, #tpu.memory_space<any>> -> memref<1x32xf32, #tpu.memory_space<any>>
    %c0_i32_17 = arith.constant 0 : i32
    %61 = tpu.memref_slice %arg4[%c8_i32, %c0_i32_17] : memref<16x32xf32, #tpu.memory_space<vmem>> -> memref<1x32xf32, #tpu.memory_space<vmem>>
    %62 = tpu.memref_slice %arg5[%c8_i32] : memref<16x!tpu.dma_semaphore, #tpu.memory_space<semaphore_mem>> -> memref<1x!tpu.dma_semaphore, #tpu.memory_space<semaphore_mem>>
    %63 = tpu.memref_squeeze %62 : memref<1x!tpu.dma_semaphore, #tpu.memory_space<semaphore_mem>> -> memref<!tpu.dma_semaphore, #tpu.memory_space<semaphore_mem>>
    tpu.enqueue_dma source(%60 : memref<1x32xf32, #tpu.memory_space<any>>) target(%61 : memref<1x32xf32, #tpu.memory_space<vmem>>) target_semaphore(%63 : memref<!tpu.dma_semaphore, #tpu.memory_space<semaphore_mem>>)
    %c9_i32 = arith.constant 9 : i32
    %64 = arith.addi %0, %c9_i32 : i32
    %65 = arith.index_cast %64 : i32 to index
    %66 = memref.load %arg1[%65] : memref<48xi32, #tpu.memory_space<smem>>
    %c0_i32_18 = arith.constant 0 : i32
    %67 = tpu.memref_slice %arg2[%66, %c0_i32_18] : memref<64x32xf32, #tpu.memory_space<any>> -> memref<1x32xf32, #tpu.memory_space<any>>
    %c0_i32_19 = arith.constant 0 : i32
    %68 = tpu.memref_slice %arg4[%c9_i32, %c0_i32_19] : memref<16x32xf32, #tpu.memory_space<vmem>> -> memref<1x32xf32, #tpu.memory_space<vmem>>
    %69 = tpu.memref_slice %arg5[%c9_i32] : memref<16x!tpu.dma_semaphore, #tpu.memory_space<semaphore_mem>> -> memref<1x!tpu.dma_semaphore, #tpu.memory_space<semaphore_mem>>
    %70 = tpu.memref_squeeze %69 : memref<1x!tpu.dma_semaphore, #tpu.memory_space<semaphore_mem>> -> memref<!tpu.dma_semaphore, #tpu.memory_space<semaphore_mem>>
    tpu.enqueue_dma source(%67 : memref<1x32xf32, #tpu.memory_space<any>>) target(%68 : memref<1x32xf32, #tpu.memory_space<vmem>>) target_semaphore(%70 : memref<!tpu.dma_semaphore, #tpu.memory_space<semaphore_mem>>)
    %c10_i32 = arith.constant 10 : i32
    %71 = arith.addi %0, %c10_i32 : i32
    %72 = arith.index_cast %71 : i32 to index
    %73 = memref.load %arg1[%72] : memref<48xi32, #tpu.memory_space<smem>>
    %c0_i32_20 = arith.constant 0 : i32
    %74 = tpu.memref_slice %arg2[%73, %c0_i32_20] : memref<64x32xf32, #tpu.memory_space<any>> -> memref<1x32xf32, #tpu.memory_space<any>>
    %c0_i32_21 = arith.constant 0 : i32
    %75 = tpu.memref_slice %arg4[%c10_i32, %c0_i32_21] : memref<16x32xf32, #tpu.memory_space<vmem>> -> memref<1x32xf32, #tpu.memory_space<vmem>>
    %76 = tpu.memref_slice %arg5[%c10_i32] : memref<16x!tpu.dma_semaphore, #tpu.memory_space<semaphore_mem>> -> memref<1x!tpu.dma_semaphore, #tpu.memory_space<semaphore_mem>>
    %77 = tpu.memref_squeeze %76 : memref<1x!tpu.dma_semaphore, #tpu.memory_space<semaphore_mem>> -> memref<!tpu.dma_semaphore, #tpu.memory_space<semaphore_mem>>
    tpu.enqueue_dma source(%74 : memref<1x32xf32, #tpu.memory_space<any>>) target(%75 : memref<1x32xf32, #tpu.memory_space<vmem>>) target_semaphore(%77 : memref<!tpu.dma_semaphore, #tpu.memory_space<semaphore_mem>>)
    %c11_i32 = arith.constant 11 : i32
    %78 = arith.addi %0, %c11_i32 : i32
    %79 = arith.index_cast %78 : i32 to index
    %80 = memref.load %arg1[%79] : memref<48xi32, #tpu.memory_space<smem>>
    %c0_i32_22 = arith.constant 0 : i32
    %81 = tpu.memref_slice %arg2[%80, %c0_i32_22] : memref<64x32xf32, #tpu.memory_space<any>> -> memref<1x32xf32, #tpu.memory_space<any>>
    %c0_i32_23 = arith.constant 0 : i32
    %82 = tpu.memref_slice %arg4[%c11_i32, %c0_i32_23] : memref<16x32xf32, #tpu.memory_space<vmem>> -> memref<1x32xf32, #tpu.memory_space<vmem>>
    %83 = tpu.memref_slice %arg5[%c11_i32] : memref<16x!tpu.dma_semaphore, #tpu.memory_space<semaphore_mem>> -> memref<1x!tpu.dma_semaphore, #tpu.memory_space<semaphore_mem>>
    %84 = tpu.memref_squeeze %83 : memref<1x!tpu.dma_semaphore, #tpu.memory_space<semaphore_mem>> -> memref<!tpu.dma_semaphore, #tpu.memory_space<semaphore_mem>>
    tpu.enqueue_dma source(%81 : memref<1x32xf32, #tpu.memory_space<any>>) target(%82 : memref<1x32xf32, #tpu.memory_space<vmem>>) target_semaphore(%84 : memref<!tpu.dma_semaphore, #tpu.memory_space<semaphore_mem>>)
    %c12_i32 = arith.constant 12 : i32
    %85 = arith.addi %0, %c12_i32 : i32
    %86 = arith.index_cast %85 : i32 to index
    %87 = memref.load %arg1[%86] : memref<48xi32, #tpu.memory_space<smem>>
    %c0_i32_24 = arith.constant 0 : i32
    %88 = tpu.memref_slice %arg2[%87, %c0_i32_24] : memref<64x32xf32, #tpu.memory_space<any>> -> memref<1x32xf32, #tpu.memory_space<any>>
    %c0_i32_25 = arith.constant 0 : i32
    %89 = tpu.memref_slice %arg4[%c12_i32, %c0_i32_25] : memref<16x32xf32, #tpu.memory_space<vmem>> -> memref<1x32xf32, #tpu.memory_space<vmem>>
    %90 = tpu.memref_slice %arg5[%c12_i32] : memref<16x!tpu.dma_semaphore, #tpu.memory_space<semaphore_mem>> -> memref<1x!tpu.dma_semaphore, #tpu.memory_space<semaphore_mem>>
    %91 = tpu.memref_squeeze %90 : memref<1x!tpu.dma_semaphore, #tpu.memory_space<semaphore_mem>> -> memref<!tpu.dma_semaphore, #tpu.memory_space<semaphore_mem>>
    tpu.enqueue_dma source(%88 : memref<1x32xf32, #tpu.memory_space<any>>) target(%89 : memref<1x32xf32, #tpu.memory_space<vmem>>) target_semaphore(%91 : memref<!tpu.dma_semaphore, #tpu.memory_space<semaphore_mem>>)
    %c13_i32 = arith.constant 13 : i32
    %92 = arith.addi %0, %c13_i32 : i32
    %93 = arith.index_cast %92 : i32 to index
    %94 = memref.load %arg1[%93] : memref<48xi32, #tpu.memory_space<smem>>
    %c0_i32_26 = arith.constant 0 : i32
    %95 = tpu.memref_slice %arg2[%94, %c0_i32_26] : memref<64x32xf32, #tpu.memory_space<any>> -> memref<1x32xf32, #tpu.memory_space<any>>
    %c0_i32_27 = arith.constant 0 : i32
    %96 = tpu.memref_slice %arg4[%c13_i32, %c0_i32_27] : memref<16x32xf32, #tpu.memory_space<vmem>> -> memref<1x32xf32, #tpu.memory_space<vmem>>
    %97 = tpu.memref_slice %arg5[%c13_i32] : memref<16x!tpu.dma_semaphore, #tpu.memory_space<semaphore_mem>> -> memref<1x!tpu.dma_semaphore, #tpu.memory_space<semaphore_mem>>
    %98 = tpu.memref_squeeze %97 : memref<1x!tpu.dma_semaphore, #tpu.memory_space<semaphore_mem>> -> memref<!tpu.dma_semaphore, #tpu.memory_space<semaphore_mem>>
    tpu.enqueue_dma source(%95 : memref<1x32xf32, #tpu.memory_space<any>>) target(%96 : memref<1x32xf32, #tpu.memory_space<vmem>>) target_semaphore(%98 : memref<!tpu.dma_semaphore, #tpu.memory_space<semaphore_mem>>)
    %c14_i32 = arith.constant 14 : i32
    %99 = arith.addi %0, %c14_i32 : i32
    %100 = arith.index_cast %99 : i32 to index
    %101 = memref.load %arg1[%100] : memref<48xi32, #tpu.memory_space<smem>>
    %c0_i32_28 = arith.constant 0 : i32
    %102 = tpu.memref_slice %arg2[%101, %c0_i32_28] : memref<64x32xf32, #tpu.memory_space<any>> -> memref<1x32xf32, #tpu.memory_space<any>>
    %c0_i32_29 = arith.constant 0 : i32
    %103 = tpu.memref_slice %arg4[%c14_i32, %c0_i32_29] : memref<16x32xf32, #tpu.memory_space<vmem>> -> memref<1x32xf32, #tpu.memory_space<vmem>>
    %104 = tpu.memref_slice %arg5[%c14_i32] : memref<16x!tpu.dma_semaphore, #tpu.memory_space<semaphore_mem>> -> memref<1x!tpu.dma_semaphore, #tpu.memory_space<semaphore_mem>>
    %105 = tpu.memref_squeeze %104 : memref<1x!tpu.dma_semaphore, #tpu.memory_space<semaphore_mem>> -> memref<!tpu.dma_semaphore, #tpu.memory_space<semaphore_mem>>
    tpu.enqueue_dma source(%102 : memref<1x32xf32, #tpu.memory_space<any>>) target(%103 : memref<1x32xf32, #tpu.memory_space<vmem>>) target_semaphore(%105 : memref<!tpu.dma_semaphore, #tpu.memory_space<semaphore_mem>>)
    %c15_i32 = arith.constant 15 : i32
    %106 = arith.addi %0, %c15_i32 : i32
    %107 = arith.index_cast %106 : i32 to index
    %108 = memref.load %arg1[%107] : memref<48xi32, #tpu.memory_space<smem>>
    %c0_i32_30 = arith.constant 0 : i32
    %109 = tpu.memref_slice %arg2[%108, %c0_i32_30] : memref<64x32xf32, #tpu.memory_space<any>> -> memref<1x32xf32, #tpu.memory_space<any>>
    %c0_i32_31 = arith.constant 0 : i32
    %110 = tpu.memref_slice %arg4[%c15_i32, %c0_i32_31] : memref<16x32xf32, #tpu.memory_space<vmem>> -> memref<1x32xf32, #tpu.memory_space<vmem>>
    %111 = tpu.memref_slice %arg5[%c15_i32] : memref<16x!tpu.dma_semaphore, #tpu.memory_space<semaphore_mem>> -> memref<1x!tpu.dma_semaphore, #tpu.memory_space<semaphore_mem>>
    %112 = tpu.memref_squeeze %111 : memref<1x!tpu.dma_semaphore, #tpu.memory_space<semaphore_mem>> -> memref<!tpu.dma_semaphore, #tpu.memory_space<semaphore_mem>>
    tpu.enqueue_dma source(%109 : memref<1x32xf32, #tpu.memory_space<any>>) target(%110 : memref<1x32xf32, #tpu.memory_space<vmem>>) target_semaphore(%112 : memref<!tpu.dma_semaphore, #tpu.memory_space<semaphore_mem>>)
    %c16_i32_32 = arith.constant 16 : i32
    %c0_i32_33 = arith.constant 0 : i32
    %c0_i32_34 = arith.constant 0 : i32
    %c0_i32_35 = arith.constant 0 : i32
    %113 = tpu.memref_slice %arg2[%c0_i32_34, %c0_i32_35] : memref<64x32xf32, #tpu.memory_space<any>> -> memref<1x32xf32, #tpu.memory_space<any>>
    %c0_i32_36 = arith.constant 0 : i32
    %114 = tpu.memref_slice %arg4[%c0_i32_33, %c0_i32_36] : memref<16x32xf32, #tpu.memory_space<vmem>> -> memref<1x32xf32, #tpu.memory_space<vmem>>
    %115 = tpu.memref_slice %arg5[%c0_i32_33] : memref<16x!tpu.dma_semaphore, #tpu.memory_space<semaphore_mem>> -> memref<1x!tpu.dma_semaphore, #tpu.memory_space<semaphore_mem>>
    %116 = tpu.memref_squeeze %115 : memref<1x!tpu.dma_semaphore, #tpu.memory_space<semaphore_mem>> -> memref<!tpu.dma_semaphore, #tpu.memory_space<semaphore_mem>>
    tpu.wait_dma2 semaphore(%116 : memref<!tpu.dma_semaphore, #tpu.memory_space<semaphore_mem>>) src(%113 : memref<1x32xf32, #tpu.memory_space<any>>) dst(%114 : memref<1x32xf32, #tpu.memory_space<vmem>>)
    %c1_i32_37 = arith.constant 1 : i32
    %c0_i32_38 = arith.constant 0 : i32
    %c0_i32_39 = arith.constant 0 : i32
    %117 = tpu.memref_slice %arg2[%c0_i32_38, %c0_i32_39] : memref<64x32xf32, #tpu.memory_space<any>> -> memref<1x32xf32, #tpu.memory_space<any>>
    %c0_i32_40 = arith.constant 0 : i32
    %118 = tpu.memref_slice %arg4[%c1_i32_37, %c0_i32_40] : memref<16x32xf32, #tpu.memory_space<vmem>> -> memref<1x32xf32, #tpu.memory_space<vmem>>
    %119 = tpu.memref_slice %arg5[%c1_i32_37] : memref<16x!tpu.dma_semaphore, #tpu.memory_space<semaphore_mem>> -> memref<1x!tpu.dma_semaphore, #tpu.memory_space<semaphore_mem>>
    %120 = tpu.memref_squeeze %119 : memref<1x!tpu.dma_semaphore, #tpu.memory_space<semaphore_mem>> -> memref<!tpu.dma_semaphore, #tpu.memory_space<semaphore_mem>>
    tpu.wait_dma2 semaphore(%120 : memref<!tpu.dma_semaphore, #tpu.memory_space<semaphore_mem>>) src(%117 : memref<1x32xf32, #tpu.memory_space<any>>) dst(%118 : memref<1x32xf32, #tpu.memory_space<vmem>>)
    %c2_i32_41 = arith.constant 2 : i32
    %c0_i32_42 = arith.constant 0 : i32
    %c0_i32_43 = arith.constant 0 : i32
    %121 = tpu.memref_slice %arg2[%c0_i32_42, %c0_i32_43] : memref<64x32xf32, #tpu.memory_space<any>> -> memref<1x32xf32, #tpu.memory_space<any>>
    %c0_i32_44 = arith.constant 0 : i32
    %122 = tpu.memref_slice %arg4[%c2_i32_41, %c0_i32_44] : memref<16x32xf32, #tpu.memory_space<vmem>> -> memref<1x32xf32, #tpu.memory_space<vmem>>
    %123 = tpu.memref_slice %arg5[%c2_i32_41] : memref<16x!tpu.dma_semaphore, #tpu.memory_space<semaphore_mem>> -> memref<1x!tpu.dma_semaphore, #tpu.memory_space<semaphore_mem>>
    %124 = tpu.memref_squeeze %123 : memref<1x!tpu.dma_semaphore, #tpu.memory_space<semaphore_mem>> -> memref<!tpu.dma_semaphore, #tpu.memory_space<semaphore_mem>>
    tpu.wait_dma2 semaphore(%124 : memref<!tpu.dma_semaphore, #tpu.memory_space<semaphore_mem>>) src(%121 : memref<1x32xf32, #tpu.memory_space<any>>) dst(%122 : memref<1x32xf32, #tpu.memory_space<vmem>>)
    %c3_i32_45 = arith.constant 3 : i32
    %c0_i32_46 = arith.constant 0 : i32
    %c0_i32_47 = arith.constant 0 : i32
    %125 = tpu.memref_slice %arg2[%c0_i32_46, %c0_i32_47] : memref<64x32xf32, #tpu.memory_space<any>> -> memref<1x32xf32, #tpu.memory_space<any>>
    %c0_i32_48 = arith.constant 0 : i32
    %126 = tpu.memref_slice %arg4[%c3_i32_45, %c0_i32_48] : memref<16x32xf32, #tpu.memory_space<vmem>> -> memref<1x32xf32, #tpu.memory_space<vmem>>
    %127 = tpu.memref_slice %arg5[%c3_i32_45] : memref<16x!tpu.dma_semaphore, #tpu.memory_space<semaphore_mem>> -> memref<1x!tpu.dma_semaphore, #tpu.memory_space<semaphore_mem>>
    %128 = tpu.memref_squeeze %127 : memref<1x!tpu.dma_semaphore, #tpu.memory_space<semaphore_mem>> -> memref<!tpu.dma_semaphore, #tpu.memory_space<semaphore_mem>>
    tpu.wait_dma2 semaphore(%128 : memref<!tpu.dma_semaphore, #tpu.memory_space<semaphore_mem>>) src(%125 : memref<1x32xf32, #tpu.memory_space<any>>) dst(%126 : memref<1x32xf32, #tpu.memory_space<vmem>>)
    %c4_i32_49 = arith.constant 4 : i32
    %c0_i32_50 = arith.constant 0 : i32
    %c0_i32_51 = arith.constant 0 : i32
    %129 = tpu.memref_slice %arg2[%c0_i32_50, %c0_i32_51] : memref<64x32xf32, #tpu.memory_space<any>> -> memref<1x32xf32, #tpu.memory_space<any>>
    %c0_i32_52 = arith.constant 0 : i32
    %130 = tpu.memref_slice %arg4[%c4_i32_49, %c0_i32_52] : memref<16x32xf32, #tpu.memory_space<vmem>> -> memref<1x32xf32, #tpu.memory_space<vmem>>
    %131 = tpu.memref_slice %arg5[%c4_i32_49] : memref<16x!tpu.dma_semaphore, #tpu.memory_space<semaphore_mem>> -> memref<1x!tpu.dma_semaphore, #tpu.memory_space<semaphore_mem>>
    %132 = tpu.memref_squeeze %131 : memref<1x!tpu.dma_semaphore, #tpu.memory_space<semaphore_mem>> -> memref<!tpu.dma_semaphore, #tpu.memory_space<semaphore_mem>>
    tpu.wait_dma2 semaphore(%132 : memref<!tpu.dma_semaphore, #tpu.memory_space<semaphore_mem>>) src(%129 : memref<1x32xf32, #tpu.memory_space<any>>) dst(%130 : memref<1x32xf32, #tpu.memory_space<vmem>>)
    %c5_i32_53 = arith.constant 5 : i32
    %c0_i32_54 = arith.constant 0 : i32
    %c0_i32_55 = arith.constant 0 : i32
    %133 = tpu.memref_slice %arg2[%c0_i32_54, %c0_i32_55] : memref<64x32xf32, #tpu.memory_space<any>> -> memref<1x32xf32, #tpu.memory_space<any>>
    %c0_i32_56 = arith.constant 0 : i32
    %134 = tpu.memref_slice %arg4[%c5_i32_53, %c0_i32_56] : memref<16x32xf32, #tpu.memory_space<vmem>> -> memref<1x32xf32, #tpu.memory_space<vmem>>
    %135 = tpu.memref_slice %arg5[%c5_i32_53] : memref<16x!tpu.dma_semaphore, #tpu.memory_space<semaphore_mem>> -> memref<1x!tpu.dma_semaphore, #tpu.memory_space<semaphore_mem>>
    %136 = tpu.memref_squeeze %135 : memref<1x!tpu.dma_semaphore, #tpu.memory_space<semaphore_mem>> -> memref<!tpu.dma_semaphore, #tpu.memory_space<semaphore_mem>>
    tpu.wait_dma2 semaphore(%136 : memref<!tpu.dma_semaphore, #tpu.memory_space<semaphore_mem>>) src(%133 : memref<1x32xf32, #tpu.memory_space<any>>) dst(%134 : memref<1x32xf32, #tpu.memory_space<vmem>>)
    %c6_i32_57 = arith.constant 6 : i32
    %c0_i32_58 = arith.constant 0 : i32
    %c0_i32_59 = arith.constant 0 : i32
    %137 = tpu.memref_slice %arg2[%c0_i32_58, %c0_i32_59] : memref<64x32xf32, #tpu.memory_space<any>> -> memref<1x32xf32, #tpu.memory_space<any>>
    %c0_i32_60 = arith.constant 0 : i32
    %138 = tpu.memref_slice %arg4[%c6_i32_57, %c0_i32_60] : memref<16x32xf32, #tpu.memory_space<vmem>> -> memref<1x32xf32, #tpu.memory_space<vmem>>
    %139 = tpu.memref_slice %arg5[%c6_i32_57] : memref<16x!tpu.dma_semaphore, #tpu.memory_space<semaphore_mem>> -> memref<1x!tpu.dma_semaphore, #tpu.memory_space<semaphore_mem>>
    %140 = tpu.memref_squeeze %139 : memref<1x!tpu.dma_semaphore, #tpu.memory_space<semaphore_mem>> -> memref<!tpu.dma_semaphore, #tpu.memory_space<semaphore_mem>>
    tpu.wait_dma2 semaphore(%140 : memref<!tpu.dma_semaphore, #tpu.memory_space<semaphore_mem>>) src(%137 : memref<1x32xf32, #tpu.memory_space<any>>) dst(%138 : memref<1x32xf32, #tpu.memory_space<vmem>>)
    %c7_i32_61 = arith.constant 7 : i32
    %c0_i32_62 = arith.constant 0 : i32
    %c0_i32_63 = arith.constant 0 : i32
    %141 = tpu.memref_slice %arg2[%c0_i32_62, %c0_i32_63] : memref<64x32xf32, #tpu.memory_space<any>> -> memref<1x32xf32, #tpu.memory_space<any>>
    %c0_i32_64 = arith.constant 0 : i32
    %142 = tpu.memref_slice %arg4[%c7_i32_61, %c0_i32_64] : memref<16x32xf32, #tpu.memory_space<vmem>> -> memref<1x32xf32, #tpu.memory_space<vmem>>
    %143 = tpu.memref_slice %arg5[%c7_i32_61] : memref<16x!tpu.dma_semaphore, #tpu.memory_space<semaphore_mem>> -> memref<1x!tpu.dma_semaphore, #tpu.memory_space<semaphore_mem>>
    %144 = tpu.memref_squeeze %143 : memref<1x!tpu.dma_semaphore, #tpu.memory_space<semaphore_mem>> -> memref<!tpu.dma_semaphore, #tpu.memory_space<semaphore_mem>>
    tpu.wait_dma2 semaphore(%144 : memref<!tpu.dma_semaphore, #tpu.memory_space<semaphore_mem>>) src(%141 : memref<1x32xf32, #tpu.memory_space<any>>) dst(%142 : memref<1x32xf32, #tpu.memory_space<vmem>>)
    %c8_i32_65 = arith.constant 8 : i32
    %c0_i32_66 = arith.constant 0 : i32
    %c0_i32_67 = arith.constant 0 : i32
    %145 = tpu.memref_slice %arg2[%c0_i32_66, %c0_i32_67] : memref<64x32xf32, #tpu.memory_space<any>> -> memref<1x32xf32, #tpu.memory_space<any>>
    %c0_i32_68 = arith.constant 0 : i32
    %146 = tpu.memref_slice %arg4[%c8_i32_65, %c0_i32_68] : memref<16x32xf32, #tpu.memory_space<vmem>> -> memref<1x32xf32, #tpu.memory_space<vmem>>
    %147 = tpu.memref_slice %arg5[%c8_i32_65] : memref<16x!tpu.dma_semaphore, #tpu.memory_space<semaphore_mem>> -> memref<1x!tpu.dma_semaphore, #tpu.memory_space<semaphore_mem>>
    %148 = tpu.memref_squeeze %147 : memref<1x!tpu.dma_semaphore, #tpu.memory_space<semaphore_mem>> -> memref<!tpu.dma_semaphore, #tpu.memory_space<semaphore_mem>>
    tpu.wait_dma2 semaphore(%148 : memref<!tpu.dma_semaphore, #tpu.memory_space<semaphore_mem>>) src(%145 : memref<1x32xf32, #tpu.memory_space<any>>) dst(%146 : memref<1x32xf32, #tpu.memory_space<vmem>>)
    %c9_i32_69 = arith.constant 9 : i32
    %c0_i32_70 = arith.constant 0 : i32
    %c0_i32_71 = arith.constant 0 : i32
    %149 = tpu.memref_slice %arg2[%c0_i32_70, %c0_i32_71] : memref<64x32xf32, #tpu.memory_space<any>> -> memref<1x32xf32, #tpu.memory_space<any>>
    %c0_i32_72 = arith.constant 0 : i32
    %150 = tpu.memref_slice %arg4[%c9_i32_69, %c0_i32_72] : memref<16x32xf32, #tpu.memory_space<vmem>> -> memref<1x32xf32, #tpu.memory_space<vmem>>
    %151 = tpu.memref_slice %arg5[%c9_i32_69] : memref<16x!tpu.dma_semaphore, #tpu.memory_space<semaphore_mem>> -> memref<1x!tpu.dma_semaphore, #tpu.memory_space<semaphore_mem>>
    %152 = tpu.memref_squeeze %151 : memref<1x!tpu.dma_semaphore, #tpu.memory_space<semaphore_mem>> -> memref<!tpu.dma_semaphore, #tpu.memory_space<semaphore_mem>>
    tpu.wait_dma2 semaphore(%152 : memref<!tpu.dma_semaphore, #tpu.memory_space<semaphore_mem>>) src(%149 : memref<1x32xf32, #tpu.memory_space<any>>) dst(%150 : memref<1x32xf32, #tpu.memory_space<vmem>>)
    %c10_i32_73 = arith.constant 10 : i32
    %c0_i32_74 = arith.constant 0 : i32
    %c0_i32_75 = arith.constant 0 : i32
    %153 = tpu.memref_slice %arg2[%c0_i32_74, %c0_i32_75] : memref<64x32xf32, #tpu.memory_space<any>> -> memref<1x32xf32, #tpu.memory_space<any>>
    %c0_i32_76 = arith.constant 0 : i32
    %154 = tpu.memref_slice %arg4[%c10_i32_73, %c0_i32_76] : memref<16x32xf32, #tpu.memory_space<vmem>> -> memref<1x32xf32, #tpu.memory_space<vmem>>
    %155 = tpu.memref_slice %arg5[%c10_i32_73] : memref<16x!tpu.dma_semaphore, #tpu.memory_space<semaphore_mem>> -> memref<1x!tpu.dma_semaphore, #tpu.memory_space<semaphore_mem>>
    %156 = tpu.memref_squeeze %155 : memref<1x!tpu.dma_semaphore, #tpu.memory_space<semaphore_mem>> -> memref<!tpu.dma_semaphore, #tpu.memory_space<semaphore_mem>>
    tpu.wait_dma2 semaphore(%156 : memref<!tpu.dma_semaphore, #tpu.memory_space<semaphore_mem>>) src(%153 : memref<1x32xf32, #tpu.memory_space<any>>) dst(%154 : memref<1x32xf32, #tpu.memory_space<vmem>>)
    %c11_i32_77 = arith.constant 11 : i32
    %c0_i32_78 = arith.constant 0 : i32
    %c0_i32_79 = arith.constant 0 : i32
    %157 = tpu.memref_slice %arg2[%c0_i32_78, %c0_i32_79] : memref<64x32xf32, #tpu.memory_space<any>> -> memref<1x32xf32, #tpu.memory_space<any>>
    %c0_i32_80 = arith.constant 0 : i32
    %158 = tpu.memref_slice %arg4[%c11_i32_77, %c0_i32_80] : memref<16x32xf32, #tpu.memory_space<vmem>> -> memref<1x32xf32, #tpu.memory_space<vmem>>
    %159 = tpu.memref_slice %arg5[%c11_i32_77] : memref<16x!tpu.dma_semaphore, #tpu.memory_space<semaphore_mem>> -> memref<1x!tpu.dma_semaphore, #tpu.memory_space<semaphore_mem>>
    %160 = tpu.memref_squeeze %159 : memref<1x!tpu.dma_semaphore, #tpu.memory_space<semaphore_mem>> -> memref<!tpu.dma_semaphore, #tpu.memory_space<semaphore_mem>>
    tpu.wait_dma2 semaphore(%160 : memref<!tpu.dma_semaphore, #tpu.memory_space<semaphore_mem>>) src(%157 : memref<1x32xf32, #tpu.memory_space<any>>) dst(%158 : memref<1x32xf32, #tpu.memory_space<vmem>>)
    %c12_i32_81 = arith.constant 12 : i32
    %c0_i32_82 = arith.constant 0 : i32
    %c0_i32_83 = arith.constant 0 : i32
    %161 = tpu.memref_slice %arg2[%c0_i32_82, %c0_i32_83] : memref<64x32xf32, #tpu.memory_space<any>> -> memref<1x32xf32, #tpu.memory_space<any>>
    %c0_i32_84 = arith.constant 0 : i32
    %162 = tpu.memref_slice %arg4[%c12_i32_81, %c0_i32_84] : memref<16x32xf32, #tpu.memory_space<vmem>> -> memref<1x32xf32, #tpu.memory_space<vmem>>
    %163 = tpu.memref_slice %arg5[%c12_i32_81] : memref<16x!tpu.dma_semaphore, #tpu.memory_space<semaphore_mem>> -> memref<1x!tpu.dma_semaphore, #tpu.memory_space<semaphore_mem>>
    %164 = tpu.memref_squeeze %163 : memref<1x!tpu.dma_semaphore, #tpu.memory_space<semaphore_mem>> -> memref<!tpu.dma_semaphore, #tpu.memory_space<semaphore_mem>>
    tpu.wait_dma2 semaphore(%164 : memref<!tpu.dma_semaphore, #tpu.memory_space<semaphore_mem>>) src(%161 : memref<1x32xf32, #tpu.memory_space<any>>) dst(%162 : memref<1x32xf32, #tpu.memory_space<vmem>>)
    %c13_i32_85 = arith.constant 13 : i32
    %c0_i32_86 = arith.constant 0 : i32
    %c0_i32_87 = arith.constant 0 : i32
    %165 = tpu.memref_slice %arg2[%c0_i32_86, %c0_i32_87] : memref<64x32xf32, #tpu.memory_space<any>> -> memref<1x32xf32, #tpu.memory_space<any>>
    %c0_i32_88 = arith.constant 0 : i32
    %166 = tpu.memref_slice %arg4[%c13_i32_85, %c0_i32_88] : memref<16x32xf32, #tpu.memory_space<vmem>> -> memref<1x32xf32, #tpu.memory_space<vmem>>
    %167 = tpu.memref_slice %arg5[%c13_i32_85] : memref<16x!tpu.dma_semaphore, #tpu.memory_space<semaphore_mem>> -> memref<1x!tpu.dma_semaphore, #tpu.memory_space<semaphore_mem>>
    %168 = tpu.memref_squeeze %167 : memref<1x!tpu.dma_semaphore, #tpu.memory_space<semaphore_mem>> -> memref<!tpu.dma_semaphore, #tpu.memory_space<semaphore_mem>>
    tpu.wait_dma2 semaphore(%168 : memref<!tpu.dma_semaphore, #tpu.memory_space<semaphore_mem>>) src(%165 : memref<1x32xf32, #tpu.memory_space<any>>) dst(%166 : memref<1x32xf32, #tpu.memory_space<vmem>>)
    %c14_i32_89 = arith.constant 14 : i32
    %c0_i32_90 = arith.constant 0 : i32
    %c0_i32_91 = arith.constant 0 : i32
    %169 = tpu.memref_slice %arg2[%c0_i32_90, %c0_i32_91] : memref<64x32xf32, #tpu.memory_space<any>> -> memref<1x32xf32, #tpu.memory_space<any>>
    %c0_i32_92 = arith.constant 0 : i32
    %170 = tpu.memref_slice %arg4[%c14_i32_89, %c0_i32_92] : memref<16x32xf32, #tpu.memory_space<vmem>> -> memref<1x32xf32, #tpu.memory_space<vmem>>
    %171 = tpu.memref_slice %arg5[%c14_i32_89] : memref<16x!tpu.dma_semaphore, #tpu.memory_space<semaphore_mem>> -> memref<1x!tpu.dma_semaphore, #tpu.memory_space<semaphore_mem>>
    %172 = tpu.memref_squeeze %171 : memref<1x!tpu.dma_semaphore, #tpu.memory_space<semaphore_mem>> -> memref<!tpu.dma_semaphore, #tpu.memory_space<semaphore_mem>>
    tpu.wait_dma2 semaphore(%172 : memref<!tpu.dma_semaphore, #tpu.memory_space<semaphore_mem>>) src(%169 : memref<1x32xf32, #tpu.memory_space<any>>) dst(%170 : memref<1x32xf32, #tpu.memory_space<vmem>>)
    %c15_i32_93 = arith.constant 15 : i32
    %c0_i32_94 = arith.constant 0 : i32
    %c0_i32_95 = arith.constant 0 : i32
    %173 = tpu.memref_slice %arg2[%c0_i32_94, %c0_i32_95] : memref<64x32xf32, #tpu.memory_space<any>> -> memref<1x32xf32, #tpu.memory_space<any>>
    %c0_i32_96 = arith.constant 0 : i32
    %174 = tpu.memref_slice %arg4[%c15_i32_93, %c0_i32_96] : memref<16x32xf32, #tpu.memory_space<vmem>> -> memref<1x32xf32, #tpu.memory_space<vmem>>
    %175 = tpu.memref_slice %arg5[%c15_i32_93] : memref<16x!tpu.dma_semaphore, #tpu.memory_space<semaphore_mem>> -> memref<1x!tpu.dma_semaphore, #tpu.memory_space<semaphore_mem>>
    %176 = tpu.memref_squeeze %175 : memref<1x!tpu.dma_semaphore, #tpu.memory_space<semaphore_mem>> -> memref<!tpu.dma_semaphore, #tpu.memory_space<semaphore_mem>>
    tpu.wait_dma2 semaphore(%176 : memref<!tpu.dma_semaphore, #tpu.memory_space<semaphore_mem>>) src(%173 : memref<1x32xf32, #tpu.memory_space<any>>) dst(%174 : memref<1x32xf32, #tpu.memory_space<vmem>>)
    %c16_i32_97 = arith.constant 16 : i32
    %c0 = arith.constant 0 : index
    %c0_98 = arith.constant 0 : index
    %177 = vector.load %arg4[%c0, %c0_98] : memref<16x32xf32, #tpu.memory_space<vmem>>, vector<16x32xf32>
    %c0_99 = arith.constant 0 : index
    %c0_100 = arith.constant 0 : index
    %178 = vector.load %arg3[%c0_99, %c0_100] : memref<16x32xf32, #tpu.memory_space<vmem>>, vector<16x32xf32>
    tpu.vector_store %arg3[%c0_99, %c0_100], %177 {strides = array<i32>} : memref<16x32xf32, #tpu.memory_space<vmem>>, vector<16x32xf32>,
    return
  }
  func.func @transform_1(%arg0: i32, %arg1: memref<48xi32, #tpu.memory_space<smem>>) -> (i32, i32) {
    %c0_i32 = arith.constant 0 : i32
    %c0_i32_0 = arith.constant 0 : i32
    return %arg0, %c0_i32 : i32, i32
  }
}

</mosaic_0001>

<llo_original>
// kernel: char_embeddings_forward.1
$region0: #{char_embeddings_forward.1}
  #allocation0 [shape = 'u32[]', space=smem, size = 0x4, offset = 0x4, fixed_abs, tag = 'smem constant byte address 0x4 - core index']
  #allocation1 [shape = 'u32[144,128]{1,0:T(1,128)}', space=vmem, size = 0x12000, scoped, tag = 'internal scratch']
  #allocation2 [shape = 'f32[16,32]{1,0:T(8,128)}', space=vmem, size = 0x2000, scoped, tag = 'scratch operand']
  #allocation3 [shape = 's32[16]{0}', space=sflag, size = 0x40, scoped, tag = 'scratch operand']
  #allocation4 [shape = 's32[1]{0}', space=sflag, size = 0x4, scoped, tag = 'scoped memory for char_embeddings_forward.1']
  #allocation5 [shape = 'u8[512]{0}', space=smem, size = 0x200, scoped, tag = 'prefetched SMEM operand 0']
  #allocation8 [shape = 's32[]', space=sflag, size = 0x4, offset = 0, fixed_abs, tag = 'sflag constant byte address 0x0 - dummy sync flag']
  #allocation9 [shape = 's32[]', space=sflag, size = 0x4, offset = 0, fixed_abs, tag = 'sflag constant byte address 0x0 - dummy sync flag']
  #allocation10 [shape = 's32[]', space=sflag, size = 0x4, offset = 0, fixed_abs, tag = 'sflag constant byte address 0x0 - dummy sync flag']
  #allocation11 [shape = 's32[]', space=sflag, size = 0x4, offset = 0, fixed_abs, tag = 'sflag constant byte address 0x0 - dummy sync flag']
  #allocation12 [shape = 's32[]', space=sflag, size = 0x4, offset = 0, fixed_abs, tag = 'sflag constant byte address 0x0 - dummy sync flag']
  #allocation13 [shape = 's32[]', space=sflag, size = 0x4, offset = 0, fixed_abs, tag = 'sflag constant byte address 0x0 - dummy sync flag']
  #allocation14 [shape = 's32[]', space=sflag, size = 0x4, offset = 0, fixed_abs, tag = 'sflag constant byte address 0x0 - dummy sync flag']
  #allocation15 [shape = 's32[]', space=sflag, size = 0x4, offset = 0, fixed_abs, tag = 'sflag constant byte address 0x0 - dummy sync flag']
  #allocation16 [shape = 's32[]', space=sflag, size = 0x4, offset = 0, fixed_abs, tag = 'sflag constant byte address 0x0 - dummy sync flag']
  #allocation17 [shape = 's32[]', space=sflag, size = 0x4, offset = 0, fixed_abs, tag = 'sflag constant byte address 0x0 - dummy sync flag']
  #allocation18 [shape = 's32[]', space=sflag, size = 0x4, offset = 0, fixed_abs, tag = 'sflag constant byte address 0x0 - dummy sync flag']
  #allocation19 [shape = 's32[]', space=sflag, size = 0x4, offset = 0, fixed_abs, tag = 'sflag constant byte address 0x0 - dummy sync flag']
  #allocation20 [shape = 's32[]', space=sflag, size = 0x4, offset = 0, fixed_abs, tag = 'sflag constant byte address 0x0 - dummy sync flag']
  #allocation21 [shape = 's32[]', space=sflag, size = 0x4, offset = 0, fixed_abs, tag = 'sflag constant byte address 0x0 - dummy sync flag']
  #allocation22 [shape = 's32[]', space=sflag, size = 0x4, offset = 0, fixed_abs, tag = 'sflag constant byte address 0x0 - dummy sync flag']
  #allocation23 [shape = 's32[]', space=sflag, size = 0x4, offset = 0, fixed_abs, tag = 'sflag constant byte address 0x0 - dummy sync flag']
  %s0 = inlined_call_operand.vmem [shape: s32[48], index: 0, kind: input, shape index: {}]
  %s1 = inlined_call_operand.vmem [shape: f32[64,32], index: 1, kind: input, shape index: {}]
  %s2 = inlined_call_operand.hbm [shape: f32[48,32], index: 2, kind: output, shape index: {}]
  %s3 = sld [smem:[#allocation0]]
  $region505: #{char_embeddings_forward.1} parent=0
    _
  %s5 = ssub.s32 1, %s3
  %s6 = scalar_select 0, %s5, %s3
  %s7 = sshll.u32 %s0, 4
  %s8 = int_to_ptr.vmem [resolvable:$true] %s7
  %10 = dma.vmem_to_smem %s8, 16, [#allocation5], [#allocation4]
  %11 = dma.done [#allocation4], 16
  %12 = sfence
  $region1: #{char_embeddings_forward.1} parent=0
    #allocation6 [shape = 'u8[16384]{0}', space=vmem, size = 0x4000, scoped, tag = 'output window, operand 0']
    #allocation7 [shape = 's32[2]{0}', space=sflag, size = 0x8, scoped, tag = 'scoped memory for char_embeddings_forward.1']
    %13 = vsyncpa [#allocation7], 0
    %s14 = scalar_lea.sflag [#allocation7], 1
    %15 = vsyncpa %s14, 0
    loop: start=0, step=1, limit=4
    $region2: #{char_embeddings_forward.1} parent=1 // loop_pre_header
      _
    $region3: #{char_embeddings_forward.1} parent=1 // loop_header
      %s17 = sphi 0, %s21
      %p18 = scmp.ge.s32.totalorder %s17, 4
      %s26 = sphi 0, %s28
      %s29 = sphi 0, %s26
      %s39 = sphi 0, %s29
    $region4: #{char_embeddings_forward.1} parent=1 // loop_header_branch
      %20 = sbr.rel (%p18) target = $region8
    $region5: #{char_embeddings_forward.1} parent=1 // loop_body
      %s22 = ssub.s32 %s17, 1
      %s23 = sadd.s32 %s17, 1
      %s24 = ssub.s32 %s17, %s23
      %p25 = scmp.eq.s32.totalorder %s24, 0
      %s27 = sadd.s32 %s26, 1
      %s28 = scalar_select %p25, %s26, %s27
      %p30 = pneg %p25
      %p31 = scmp.eq.s32.totalorder %s17, 2
      %p32 = por %p30, %p31
      %p33 = scmp.ne.s32.totalorder %s26, %s29
      %p34 = scmp.eq.s32.totalorder %s17, 0
      %p35 = por %p33, %p34
      %p36 = scmp.ne.s32.totalorder %s26, %s29
      %p37 = scmp.eq.s32.totalorder %s22, 2
      %p38 = por %p36, %p37
      %p40 = scmp.ne.s32.totalorder %s29, %s39
      %p41 = scmp.eq.s32.totalorder %s22, 0
      %p42 = por %p40, %p41
      %p43 = scmp.lt.s32.totalorder %s17, 3
      // Predicated region
      $region9: #{char_embeddings_forward.1} parent=5 // pred_check
        %p44 = pneg %p43
      $region10: #{char_embeddings_forward.1} parent=5 // pred_check_branch
        %46 = sbr.rel (%p44) target = $region12
      $region11: #{char_embeddings_forward.1} parent=5 // pred_region
        %p47 = pneg %p35
        %p48 = pneg %p32
        %s49 = sand.u32 %s26, 1
        %s50 = scalar_lea.sflag [#allocation7], %s49
        %s51 = sand.u32 %s26, 1
        %s52 = smul.addr %s51, 16
        %s53 = scalar_lea.vmem [#allocation6], %s52
        %s54 = smul.u32 2, %s17
        %s55 = smul.u32 %s17, 16
        %s56 = sld [smem:[#allocation5 + %s55]]
        %s57 = scalar_lea.vmem %s1, %s56
        %p59 = scmp.lt.u32.totalorder 1, 8
        %p60 = pneg %p59
        // Predicated region
        $region13: #{char_embeddings_forward.1} parent=11 // pred_check
          _
        $region14: #{char_embeddings_forward.1} parent=11 // pred_check_branch
          %62 = sbr.rel (%p59) target = $region16
        $region15: #{char_embeddings_forward.1} parent=11 // pred_region
          %s77 = sand.u32 1, 7
          %p78 = scmp.eq.s32.totalorder %s77, 0
          %p79 = pneg %p78
          // Predicated region
          $region28: #{char_embeddings_forward.1} parent=15 // pred_check
            _
          $region29: #{char_embeddings_forward.1} parent=15 // pred_check_branch
            %81 = sbr.rel (%p78) target = $region31
          $region30: #{char_embeddings_forward.1} parent=15 // pred_region
            %s82 = sand.u32 1, 7
            %s83 = ssub.s32 1, %s82
            %s84 = scalar_lea.vmem %s57, %s83
            %s85 = ssub.s32 1, %s82
            %s86 = scalar_lea.vmem [#allocation2], %s85
            %s87 = sshllo.u32 0, %s82
            loop: start=0, step=1, limit=1
            $region32: #{char_embeddings_forward.1} parent=30 // loop_pre_header
              _
            $region33: #{char_embeddings_forward.1} parent=30 // loop_header
              %s89 = sphi 0, %s93
              %p90 = scmp.ge.s32.totalorder %s89, 1
              %s94 = sphi %s84, %s84
              %s95 = sphi %s86, %s86
            $region34: #{char_embeddings_forward.1} parent=30 // loop_header_branch
              %92 = sbr.rel (%p90) target = $region38
            $region35: #{char_embeddings_forward.1} parent=30 // loop_body
              %v96 = vld [vmem:[%s94] sm:%s87]
              %97 = vst [vmem:[%s95] sm:%s87] %v96
            $region36: #{char_embeddings_forward.1} parent=30 // loop_footer
              %s93 = sadd.s32 1, %s89
            $region37: #{char_embeddings_forward.1} parent=30 // loop_footer_branch
              %88 = sbr.rel target = $region33
            $region38: #{char_embeddings_forward.1} parent=30 // loop_exit
              _
          $region31: #{char_embeddings_forward.1} parent=15 // pred_fallthru
            _
        $region16: #{char_embeddings_forward.1} parent=11 // pred_fallthru
          _
        // Predicated region
        $region17: #{char_embeddings_forward.1} parent=11 // pred_check
          %p63 = pneg %p59
        $region18: #{char_embeddings_forward.1} parent=11 // pred_check_branch
          %65 = sbr.rel (%p63) target = $region20
        $region19: #{char_embeddings_forward.1} parent=11 // pred_region
          %s66 = sshllo.u32 0, 1
          loop: start=0, step=1, limit=1
          $region21: #{char_embeddings_forward.1} parent=19 // loop_pre_header
            _
          $region22: #{char_embeddings_forward.1} parent=19 // loop_header
            %s68 = sphi 0, %s72
            %p69 = scmp.ge.s32.totalorder %s68, 1
            %s73 = sphi %s57, %s57
            %s74 = sphi [#allocation2], [#allocation2]
          $region23: #{char_embeddings_forward.1} parent=19 // loop_header_branch
            %71 = sbr.rel (%p69) target = $region27
          $region24: #{char_embeddings_forward.1} parent=19 // loop_body
            %v75 = vld [vmem:[%s73] sm:%s66]
            %76 = vst [vmem:[%s74] sm:%s66] %v75
          $region25: #{char_embeddings_forward.1} parent=19 // loop_footer
            %s72 = sadd.s32 1, %s68
          $region26: #{char_embeddings_forward.1} parent=19 // loop_footer_branch
            %67 = sbr.rel target = $region22
          $region27: #{char_embeddings_forward.1} parent=19 // loop_exit
            _
        $region20: #{char_embeddings_forward.1} parent=11 // pred_fallthru
          _
        // Predicated region
        $region39: #{char_embeddings_forward.1} parent=11 // pred_check
          _
        $region40: #{char_embeddings_forward.1} parent=11 // pred_check_branch
          %100 = sbr.rel (0) target = $region42
        $region41: #{char_embeddings_forward.1} parent=11 // pred_region
          %101 = vsyncadd [#allocation3], 16
        $region42: #{char_embeddings_forward.1} parent=11 // pred_fallthru
          _
        %s102 = sadd.s32 %s55, 1
        %s103 = sld [smem:[#allocation5 + %s102]]
        %s104 = scalar_lea.vmem %s1, %s103
        %s105 = scalar_lea.vmem [#allocation2], 1
        %s106 = scalar_lea.sflag [#allocation3], 1
        %p108 = scmp.lt.u32.totalorder 1, 8
        %p109 = pneg %p108
        // Predicated region
        $region43: #{char_embeddings_forward.1} parent=11 // pred_check
          _
        $region44: #{char_embeddings_forward.1} parent=11 // pred_check_branch
          %111 = sbr.rel (%p108) target = $region46
        $region45: #{char_embeddings_forward.1} parent=11 // pred_region
          %s126 = sand.u32 1, 7
          %p127 = scmp.eq.s32.totalorder %s126, 0
          %p128 = pneg %p127
          // Predicated region
          $region58: #{char_embeddings_forward.1} parent=45 // pred_check
            _
          $region59: #{char_embeddings_forward.1} parent=45 // pred_check_branch
            %130 = sbr.rel (%p127) target = $region61
          $region60: #{char_embeddings_forward.1} parent=45 // pred_region
            %s131 = sand.u32 1, 7
            %s132 = ssub.s32 1, %s131
            %s133 = scalar_lea.vmem %s104, %s132
            %s134 = ssub.s32 1, %s131
            %s135 = scalar_lea.vmem %s105, %s134 [#allocation2]
            %s136 = sshllo.u32 0, %s131
            loop: start=0, step=1, limit=1
            $region62: #{char_embeddings_forward.1} parent=60 // loop_pre_header
              _
            $region63: #{char_embeddings_forward.1} parent=60 // loop_header
              %s138 = sphi 0, %s142
              %p139 = scmp.ge.s32.totalorder %s138, 1
              %s143 = sphi %s133, %s133
              %s144 = sphi %s135, %s135
            $region64: #{char_embeddings_forward.1} parent=60 // loop_header_branch
              %141 = sbr.rel (%p139) target = $region68
            $region65: #{char_embeddings_forward.1} parent=60 // loop_body
              %v145 = vld [vmem:[%s143] sm:%s136]
              %146 = vst [vmem:[%s144] sm:%s136] %v145
            $region66: #{char_embeddings_forward.1} parent=60 // loop_footer
              %s142 = sadd.s32 1, %s138
            $region67: #{char_embeddings_forward.1} parent=60 // loop_footer_branch
              %137 = sbr.rel target = $region63
            $region68: #{char_embeddings_forward.1} parent=60 // loop_exit
              _
          $region61: #{char_embeddings_forward.1} parent=45 // pred_fallthru
            _
        $region46: #{char_embeddings_forward.1} parent=11 // pred_fallthru
          _
        // Predicated region
        $region47: #{char_embeddings_forward.1} parent=11 // pred_check
          %p112 = pneg %p108
        $region48: #{char_embeddings_forward.1} parent=11 // pred_check_branch
          %114 = sbr.rel (%p112) target = $region50
        $region49: #{char_embeddings_forward.1} parent=11 // pred_region
          %s115 = sshllo.u32 0, 1
          loop: start=0, step=1, limit=1
          $region51: #{char_embeddings_forward.1} parent=49 // loop_pre_header
            _
          $region52: #{char_embeddings_forward.1} parent=49 // loop_header
            %s117 = sphi 0, %s121
            %p118 = scmp.ge.s32.totalorder %s117, 1
            %s122 = sphi %s104, %s104
            %s123 = sphi %s105, %s105
          $region53: #{char_embeddings_forward.1} parent=49 // loop_header_branch
            %120 = sbr.rel (%p118) target = $region57
          $region54: #{char_embeddings_forward.1} parent=49 // loop_body
            %v124 = vld [vmem:[%s122] sm:%s115]
            %125 = vst [vmem:[%s123] sm:%s115] %v124
          $region55: #{char_embeddings_forward.1} parent=49 // loop_footer
            %s121 = sadd.s32 1, %s117
          $region56: #{char_embeddings_forward.1} parent=49 // loop_footer_branch
            %116 = sbr.rel target = $region52
          $region57: #{char_embeddings_forward.1} parent=49 // loop_exit
            _
        $region50: #{char_embeddings_forward.1} parent=11 // pred_fallthru
          _
        // Predicated region
        $region69: #{char_embeddings_forward.1} parent=11 // pred_check
          _
        $region70: #{char_embeddings_forward.1} parent=11 // pred_check_branch
          %149 = sbr.rel (0) target = $region72
        $region71: #{char_embeddings_forward.1} parent=11 // pred_region
          %150 = vsyncadd %s106, 16
        $region72: #{char_embeddings_forward.1} parent=11 // pred_fallthru
          _
        %s151 = sadd.s32 %s55, 2
        %s152 = sld [smem:[#allocation5 + %s151]]
        %s153 = scalar_lea.vmem %s1, %s152
        %s154 = scalar_lea.vmem [#allocation2], 2
        %s155 = scalar_lea.sflag [#allocation3], 2
        %p157 = scmp.lt.u32.totalorder 1, 8
        %p158 = pneg %p157
        // Predicated region
        $region73: #{char_embeddings_forward.1} parent=11 // pred_check
          _
        $region74: #{char_embeddings_forward.1} parent=11 // pred_check_branch
          %160 = sbr.rel (%p157) target = $region76
        $region75: #{char_embeddings_forward.1} parent=11 // pred_region
          %s175 = sand.u32 1, 7
          %p176 = scmp.eq.s32.totalorder %s175, 0
          %p177 = pneg %p176
          // Predicated region
          $region88: #{char_embeddings_forward.1} parent=75 // pred_check
            _
          $region89: #{char_embeddings_forward.1} parent=75 // pred_check_branch
            %179 = sbr.rel (%p176) target = $region91
          $region90: #{char_embeddings_forward.1} parent=75 // pred_region
            %s180 = sand.u32 1, 7
            %s181 = ssub.s32 1, %s180
            %s182 = scalar_lea.vmem %s153, %s181
            %s183 = ssub.s32 1, %s180
            %s184 = scalar_lea.vmem %s154, %s183 [#allocation2]
            %s185 = sshllo.u32 0, %s180
            loop: start=0, step=1, limit=1
            $region92: #{char_embeddings_forward.1} parent=90 // loop_pre_header
              _
            $region93: #{char_embeddings_forward.1} parent=90 // loop_header
              %s187 = sphi 0, %s191
              %p188 = scmp.ge.s32.totalorder %s187, 1
              %s192 = sphi %s182, %s182
              %s193 = sphi %s184, %s184
            $region94: #{char_embeddings_forward.1} parent=90 // loop_header_branch
              %190 = sbr.rel (%p188) target = $region98
            $region95: #{char_embeddings_forward.1} parent=90 // loop_body
              %v194 = vld [vmem:[%s192] sm:%s185]
              %195 = vst [vmem:[%s193] sm:%s185] %v194
            $region96: #{char_embeddings_forward.1} parent=90 // loop_footer
              %s191 = sadd.s32 1, %s187
            $region97: #{char_embeddings_forward.1} parent=90 // loop_footer_branch
              %186 = sbr.rel target = $region93
            $region98: #{char_embeddings_forward.1} parent=90 // loop_exit
              _
          $region91: #{char_embeddings_forward.1} parent=75 // pred_fallthru
            _
        $region76: #{char_embeddings_forward.1} parent=11 // pred_fallthru
          _
        // Predicated region
        $region77: #{char_embeddings_forward.1} parent=11 // pred_check
          %p161 = pneg %p157
        $region78: #{char_embeddings_forward.1} parent=11 // pred_check_branch
          %163 = sbr.rel (%p161) target = $region80
        $region79: #{char_embeddings_forward.1} parent=11 // pred_region
          %s164 = sshllo.u32 0, 1
          loop: start=0, step=1, limit=1
          $region81: #{char_embeddings_forward.1} parent=79 // loop_pre_header
            _
          $region82: #{char_embeddings_forward.1} parent=79 // loop_header
            %s166 = sphi 0, %s170
            %p167 = scmp.ge.s32.totalorder %s166, 1
            %s171 = sphi %s153, %s153
            %s172 = sphi %s154, %s154
          $region83: #{char_embeddings_forward.1} parent=79 // loop_header_branch
            %169 = sbr.rel (%p167) target = $region87
          $region84: #{char_embeddings_forward.1} parent=79 // loop_body
            %v173 = vld [vmem:[%s171] sm:%s164]
            %174 = vst [vmem:[%s172] sm:%s164] %v173
          $region85: #{char_embeddings_forward.1} parent=79 // loop_footer
            %s170 = sadd.s32 1, %s166
          $region86: #{char_embeddings_forward.1} parent=79 // loop_footer_branch
            %165 = sbr.rel target = $region82
          $region87: #{char_embeddings_forward.1} parent=79 // loop_exit
            _
        $region80: #{char_embeddings_forward.1} parent=11 // pred_fallthru
          _
        // Predicated region
        $region99: #{char_embeddings_forward.1} parent=11 // pred_check
          _
        $region100: #{char_embeddings_forward.1} parent=11 // pred_check_branch
          %198 = sbr.rel (0) target = $region102
        $region101: #{char_embeddings_forward.1} parent=11 // pred_region
          %199 = vsyncadd %s155, 16
        $region102: #{char_embeddings_forward.1} parent=11 // pred_fallthru
          _
        %s200 = sadd.s32 %s55, 3
        %s201 = sld [smem:[#allocation5 + %s200]]
        %s202 = scalar_lea.vmem %s1, %s201
        %s203 = scalar_lea.vmem [#allocation2], 3
        %s204 = scalar_lea.sflag [#allocation3], 3
        %p206 = scmp.lt.u32.totalorder 1, 8
        %p207 = pneg %p206
        // Predicated region
        $region103: #{char_embeddings_forward.1} parent=11 // pred_check
          _
        $region104: #{char_embeddings_forward.1} parent=11 // pred_check_branch
          %209 = sbr.rel (%p206) target = $region106
        $region105: #{char_embeddings_forward.1} parent=11 // pred_region
          %s224 = sand.u32 1, 7
          %p225 = scmp.eq.s32.totalorder %s224, 0
          %p226 = pneg %p225
          // Predicated region
          $region118: #{char_embeddings_forward.1} parent=105 // pred_check
            _
          $region119: #{char_embeddings_forward.1} parent=105 // pred_check_branch
            %228 = sbr.rel (%p225) target = $region121
          $region120: #{char_embeddings_forward.1} parent=105 // pred_region
            %s229 = sand.u32 1, 7
            %s230 = ssub.s32 1, %s229
            %s231 = scalar_lea.vmem %s202, %s230
            %s232 = ssub.s32 1, %s229
            %s233 = scalar_lea.vmem %s203, %s232 [#allocation2]
            %s234 = sshllo.u32 0, %s229
            loop: start=0, step=1, limit=1
            $region122: #{char_embeddings_forward.1} parent=120 // loop_pre_header
              _
            $region123: #{char_embeddings_forward.1} parent=120 // loop_header
              %s236 = sphi 0, %s240
              %p237 = scmp.ge.s32.totalorder %s236, 1
              %s241 = sphi %s231, %s231
              %s242 = sphi %s233, %s233
            $region124: #{char_embeddings_forward.1} parent=120 // loop_header_branch
              %239 = sbr.rel (%p237) target = $region128
            $region125: #{char_embeddings_forward.1} parent=120 // loop_body
              %v243 = vld [vmem:[%s241] sm:%s234]
              %244 = vst [vmem:[%s242] sm:%s234] %v243
            $region126: #{char_embeddings_forward.1} parent=120 // loop_footer
              %s240 = sadd.s32 1, %s236
            $region127: #{char_embeddings_forward.1} parent=120 // loop_footer_branch
              %235 = sbr.rel target = $region123
            $region128: #{char_embeddings_forward.1} parent=120 // loop_exit
              _
          $region121: #{char_embeddings_forward.1} parent=105 // pred_fallthru
            _
        $region106: #{char_embeddings_forward.1} parent=11 // pred_fallthru
          _
        // Predicated region
        $region107: #{char_embeddings_forward.1} parent=11 // pred_check
          %p210 = pneg %p206
        $region108: #{char_embeddings_forward.1} parent=11 // pred_check_branch
          %212 = sbr.rel (%p210) target = $region110
        $region109: #{char_embeddings_forward.1} parent=11 // pred_region
          %s213 = sshllo.u32 0, 1
          loop: start=0, step=1, limit=1
          $region111: #{char_embeddings_forward.1} parent=109 // loop_pre_header
            _
          $region112: #{char_embeddings_forward.1} parent=109 // loop_header
            %s215 = sphi 0, %s219
            %p216 = scmp.ge.s32.totalorder %s215, 1
            %s220 = sphi %s202, %s202
            %s221 = sphi %s203, %s203
          $region113: #{char_embeddings_forward.1} parent=109 // loop_header_branch
            %218 = sbr.rel (%p216) target = $region117
          $region114: #{char_embeddings_forward.1} parent=109 // loop_body
            %v222 = vld [vmem:[%s220] sm:%s213]
            %223 = vst [vmem:[%s221] sm:%s213] %v222
          $region115: #{char_embeddings_forward.1} parent=109 // loop_footer
            %s219 = sadd.s32 1, %s215
          $region116: #{char_embeddings_forward.1} parent=109 // loop_footer_branch
            %214 = sbr.rel target = $region112
          $region117: #{char_embeddings_forward.1} parent=109 // loop_exit
            _
        $region110: #{char_embeddings_forward.1} parent=11 // pred_fallthru
          _
        // Predicated region
        $region129: #{char_embeddings_forward.1} parent=11 // pred_check
          _
        $region130: #{char_embeddings_forward.1} parent=11 // pred_check_branch
          %247 = sbr.rel (0) target = $region132
        $region131: #{char_embeddings_forward.1} parent=11 // pred_region
          %248 = vsyncadd %s204, 16
        $region132: #{char_embeddings_forward.1} parent=11 // pred_fallthru
          _
        %s249 = sadd.s32 %s55, 4
        %s250 = sld [smem:[#allocation5 + %s249]]
        %s251 = scalar_lea.vmem %s1, %s250
        %s252 = scalar_lea.vmem [#allocation2], 4
        %s253 = scalar_lea.sflag [#allocation3], 4
        %p255 = scmp.lt.u32.totalorder 1, 8
        %p256 = pneg %p255
        // Predicated region
        $region133: #{char_embeddings_forward.1} parent=11 // pred_check
          _
        $region134: #{char_embeddings_forward.1} parent=11 // pred_check_branch
          %258 = sbr.rel (%p255) target = $region136
        $region135: #{char_embeddings_forward.1} parent=11 // pred_region
          %s273 = sand.u32 1, 7
          %p274 = scmp.eq.s32.totalorder %s273, 0
          %p275 = pneg %p274
          // Predicated region
          $region148: #{char_embeddings_forward.1} parent=135 // pred_check
            _
          $region149: #{char_embeddings_forward.1} parent=135 // pred_check_branch
            %277 = sbr.rel (%p274) target = $region151
          $region150: #{char_embeddings_forward.1} parent=135 // pred_region
            %s278 = sand.u32 1, 7
            %s279 = ssub.s32 1, %s278
            %s280 = scalar_lea.vmem %s251, %s279
            %s281 = ssub.s32 1, %s278
            %s282 = scalar_lea.vmem %s252, %s281 [#allocation2]
            %s283 = sshllo.u32 0, %s278
            loop: start=0, step=1, limit=1
            $region152: #{char_embeddings_forward.1} parent=150 // loop_pre_header
              _
            $region153: #{char_embeddings_forward.1} parent=150 // loop_header
              %s285 = sphi 0, %s289
              %p286 = scmp.ge.s32.totalorder %s285, 1
              %s290 = sphi %s280, %s280
              %s291 = sphi %s282, %s282
            $region154: #{char_embeddings_forward.1} parent=150 // loop_header_branch
              %288 = sbr.rel (%p286) target = $region158
            $region155: #{char_embeddings_forward.1} parent=150 // loop_body
              %v292 = vld [vmem:[%s290] sm:%s283]
              %293 = vst [vmem:[%s291] sm:%s283] %v292
            $region156: #{char_embeddings_forward.1} parent=150 // loop_footer
              %s289 = sadd.s32 1, %s285
            $region157: #{char_embeddings_forward.1} parent=150 // loop_footer_branch
              %284 = sbr.rel target = $region153
            $region158: #{char_embeddings_forward.1} parent=150 // loop_exit
              _
          $region151: #{char_embeddings_forward.1} parent=135 // pred_fallthru
            _
        $region136: #{char_embeddings_forward.1} parent=11 // pred_fallthru
          _
        // Predicated region
        $region137: #{char_embeddings_forward.1} parent=11 // pred_check
          %p259 = pneg %p255
        $region138: #{char_embeddings_forward.1} parent=11 // pred_check_branch
          %261 = sbr.rel (%p259) target = $region140
        $region139: #{char_embeddings_forward.1} parent=11 // pred_region
          %s262 = sshllo.u32 0, 1
          loop: start=0, step=1, limit=1
          $region141: #{char_embeddings_forward.1} parent=139 // loop_pre_header
            _
          $region142: #{char_embeddings_forward.1} parent=139 // loop_header
            %s264 = sphi 0, %s268
            %p265 = scmp.ge.s32.totalorder %s264, 1
            %s269 = sphi %s251, %s251
            %s270 = sphi %s252, %s252
          $region143: #{char_embeddings_forward.1} parent=139 // loop_header_branch
            %267 = sbr.rel (%p265) target = $region147
          $region144: #{char_embeddings_forward.1} parent=139 // loop_body
            %v271 = vld [vmem:[%s269] sm:%s262]
            %272 = vst [vmem:[%s270] sm:%s262] %v271
          $region145: #{char_embeddings_forward.1} parent=139 // loop_footer
            %s268 = sadd.s32 1, %s264
          $region146: #{char_embeddings_forward.1} parent=139 // loop_footer_branch
            %263 = sbr.rel target = $region142
          $region147: #{char_embeddings_forward.1} parent=139 // loop_exit
            _
        $region140: #{char_embeddings_forward.1} parent=11 // pred_fallthru
          _
        // Predicated region
        $region159: #{char_embeddings_forward.1} parent=11 // pred_check
          _
        $region160: #{char_embeddings_forward.1} parent=11 // pred_check_branch
          %296 = sbr.rel (0) target = $region162
        $region161: #{char_embeddings_forward.1} parent=11 // pred_region
          %297 = vsyncadd %s253, 16
        $region162: #{char_embeddings_forward.1} parent=11 // pred_fallthru
          _
        %s298 = sadd.s32 %s55, 5
        %s299 = sld [smem:[#allocation5 + %s298]]
        %s300 = scalar_lea.vmem %s1, %s299
        %s301 = scalar_lea.vmem [#allocation2], 5
        %s302 = scalar_lea.sflag [#allocation3], 5
        %p304 = scmp.lt.u32.totalorder 1, 8
        %p305 = pneg %p304
        // Predicated region
        $region163: #{char_embeddings_forward.1} parent=11 // pred_check
          _
        $region164: #{char_embeddings_forward.1} parent=11 // pred_check_branch
          %307 = sbr.rel (%p304) target = $region166
        $region165: #{char_embeddings_forward.1} parent=11 // pred_region
          %s322 = sand.u32 1, 7
          %p323 = scmp.eq.s32.totalorder %s322, 0
          %p324 = pneg %p323
          // Predicated region
          $region178: #{char_embeddings_forward.1} parent=165 // pred_check
            _
          $region179: #{char_embeddings_forward.1} parent=165 // pred_check_branch
            %326 = sbr.rel (%p323) target = $region181
          $region180: #{char_embeddings_forward.1} parent=165 // pred_region
            %s327 = sand.u32 1, 7
            %s328 = ssub.s32 1, %s327
            %s329 = scalar_lea.vmem %s300, %s328
            %s330 = ssub.s32 1, %s327
            %s331 = scalar_lea.vmem %s301, %s330 [#allocation2]
            %s332 = sshllo.u32 0, %s327
            loop: start=0, step=1, limit=1
            $region182: #{char_embeddings_forward.1} parent=180 // loop_pre_header
              _
            $region183: #{char_embeddings_forward.1} parent=180 // loop_header
              %s334 = sphi 0, %s338
              %p335 = scmp.ge.s32.totalorder %s334, 1
              %s339 = sphi %s329, %s329
              %s340 = sphi %s331, %s331
            $region184: #{char_embeddings_forward.1} parent=180 // loop_header_branch
              %337 = sbr.rel (%p335) target = $region188
            $region185: #{char_embeddings_forward.1} parent=180 // loop_body
              %v341 = vld [vmem:[%s339] sm:%s332]
              %342 = vst [vmem:[%s340] sm:%s332] %v341
            $region186: #{char_embeddings_forward.1} parent=180 // loop_footer
              %s338 = sadd.s32 1, %s334
            $region187: #{char_embeddings_forward.1} parent=180 // loop_footer_branch
              %333 = sbr.rel target = $region183
            $region188: #{char_embeddings_forward.1} parent=180 // loop_exit
              _
          $region181: #{char_embeddings_forward.1} parent=165 // pred_fallthru
            _
        $region166: #{char_embeddings_forward.1} parent=11 // pred_fallthru
          _
        // Predicated region
        $region167: #{char_embeddings_forward.1} parent=11 // pred_check
          %p308 = pneg %p304
        $region168: #{char_embeddings_forward.1} parent=11 // pred_check_branch
          %310 = sbr.rel (%p308) target = $region170
        $region169: #{char_embeddings_forward.1} parent=11 // pred_region
          %s311 = sshllo.u32 0, 1
          loop: start=0, step=1, limit=1
          $region171: #{char_embeddings_forward.1} parent=169 // loop_pre_header
            _
          $region172: #{char_embeddings_forward.1} parent=169 // loop_header
            %s313 = sphi 0, %s317
            %p314 = scmp.ge.s32.totalorder %s313, 1
            %s318 = sphi %s300, %s300
            %s319 = sphi %s301, %s301
          $region173: #{char_embeddings_forward.1} parent=169 // loop_header_branch
            %316 = sbr.rel (%p314) target = $region177
          $region174: #{char_embeddings_forward.1} parent=169 // loop_body
            %v320 = vld [vmem:[%s318] sm:%s311]
            %321 = vst [vmem:[%s319] sm:%s311] %v320
          $region175: #{char_embeddings_forward.1} parent=169 // loop_footer
            %s317 = sadd.s32 1, %s313
          $region176: #{char_embeddings_forward.1} parent=169 // loop_footer_branch
            %312 = sbr.rel target = $region172
          $region177: #{char_embeddings_forward.1} parent=169 // loop_exit
            _
        $region170: #{char_embeddings_forward.1} parent=11 // pred_fallthru
          _
        // Predicated region
        $region189: #{char_embeddings_forward.1} parent=11 // pred_check
          _
        $region190: #{char_embeddings_forward.1} parent=11 // pred_check_branch
          %345 = sbr.rel (0) target = $region192
        $region191: #{char_embeddings_forward.1} parent=11 // pred_region
          %346 = vsyncadd %s302, 16
        $region192: #{char_embeddings_forward.1} parent=11 // pred_fallthru
          _
        %s347 = sadd.s32 %s55, 6
        %s348 = sld [smem:[#allocation5 + %s347]]
        %s349 = scalar_lea.vmem %s1, %s348
        %s350 = scalar_lea.vmem [#allocation2], 6
        %s351 = scalar_lea.sflag [#allocation3], 6
        %p353 = scmp.lt.u32.totalorder 1, 8
        %p354 = pneg %p353
        // Predicated region
        $region193: #{char_embeddings_forward.1} parent=11 // pred_check
          _
        $region194: #{char_embeddings_forward.1} parent=11 // pred_check_branch
          %356 = sbr.rel (%p353) target = $region196
        $region195: #{char_embeddings_forward.1} parent=11 // pred_region
          %s371 = sand.u32 1, 7
          %p372 = scmp.eq.s32.totalorder %s371, 0
          %p373 = pneg %p372
          // Predicated region
          $region208: #{char_embeddings_forward.1} parent=195 // pred_check
            _
          $region209: #{char_embeddings_forward.1} parent=195 // pred_check_branch
            %375 = sbr.rel (%p372) target = $region211
          $region210: #{char_embeddings_forward.1} parent=195 // pred_region
            %s376 = sand.u32 1, 7
            %s377 = ssub.s32 1, %s376
            %s378 = scalar_lea.vmem %s349, %s377
            %s379 = ssub.s32 1, %s376
            %s380 = scalar_lea.vmem %s350, %s379 [#allocation2]
            %s381 = sshllo.u32 0, %s376
            loop: start=0, step=1, limit=1
            $region212: #{char_embeddings_forward.1} parent=210 // loop_pre_header
              _
            $region213: #{char_embeddings_forward.1} parent=210 // loop_header
              %s383 = sphi 0, %s387
              %p384 = scmp.ge.s32.totalorder %s383, 1
              %s388 = sphi %s378, %s378
              %s389 = sphi %s380, %s380
            $region214: #{char_embeddings_forward.1} parent=210 // loop_header_branch
              %386 = sbr.rel (%p384) target = $region218
            $region215: #{char_embeddings_forward.1} parent=210 // loop_body
              %v390 = vld [vmem:[%s388] sm:%s381]
              %391 = vst [vmem:[%s389] sm:%s381] %v390
            $region216: #{char_embeddings_forward.1} parent=210 // loop_footer
              %s387 = sadd.s32 1, %s383
            $region217: #{char_embeddings_forward.1} parent=210 // loop_footer_branch
              %382 = sbr.rel target = $region213
            $region218: #{char_embeddings_forward.1} parent=210 // loop_exit
              _
          $region211: #{char_embeddings_forward.1} parent=195 // pred_fallthru
            _
        $region196: #{char_embeddings_forward.1} parent=11 // pred_fallthru
          _
        // Predicated region
        $region197: #{char_embeddings_forward.1} parent=11 // pred_check
          %p357 = pneg %p353
        $region198: #{char_embeddings_forward.1} parent=11 // pred_check_branch
          %359 = sbr.rel (%p357) target = $region200
        $region199: #{char_embeddings_forward.1} parent=11 // pred_region
          %s360 = sshllo.u32 0, 1
          loop: start=0, step=1, limit=1
          $region201: #{char_embeddings_forward.1} parent=199 // loop_pre_header
            _
          $region202: #{char_embeddings_forward.1} parent=199 // loop_header
            %s362 = sphi 0, %s366
            %p363 = scmp.ge.s32.totalorder %s362, 1
            %s367 = sphi %s349, %s349
            %s368 = sphi %s350, %s350
          $region203: #{char_embeddings_forward.1} parent=199 // loop_header_branch
            %365 = sbr.rel (%p363) target = $region207
          $region204: #{char_embeddings_forward.1} parent=199 // loop_body
            %v369 = vld [vmem:[%s367] sm:%s360]
            %370 = vst [vmem:[%s368] sm:%s360] %v369
          $region205: #{char_embeddings_forward.1} parent=199 // loop_footer
            %s366 = sadd.s32 1, %s362
          $region206: #{char_embeddings_forward.1} parent=199 // loop_footer_branch
            %361 = sbr.rel target = $region202
          $region207: #{char_embeddings_forward.1} parent=199 // loop_exit
            _
        $region200: #{char_embeddings_forward.1} parent=11 // pred_fallthru
          _
        // Predicated region
        $region219: #{char_embeddings_forward.1} parent=11 // pred_check
          _
        $region220: #{char_embeddings_forward.1} parent=11 // pred_check_branch
          %394 = sbr.rel (0) target = $region222
        $region221: #{char_embeddings_forward.1} parent=11 // pred_region
          %395 = vsyncadd %s351, 16
        $region222: #{char_embeddings_forward.1} parent=11 // pred_fallthru
          _
        %s396 = sadd.s32 %s55, 7
        %s397 = sld [smem:[#allocation5 + %s396]]
        %s398 = scalar_lea.vmem %s1, %s397
        %s399 = scalar_lea.vmem [#allocation2], 7
        %s400 = scalar_lea.sflag [#allocation3], 7
        %p402 = scmp.lt.u32.totalorder 1, 8
        %p403 = pneg %p402
        // Predicated region
        $region223: #{char_embeddings_forward.1} parent=11 // pred_check
          _
        $region224: #{char_embeddings_forward.1} parent=11 // pred_check_branch
          %405 = sbr.rel (%p402) target = $region226
        $region225: #{char_embeddings_forward.1} parent=11 // pred_region
          %s420 = sand.u32 1, 7
          %p421 = scmp.eq.s32.totalorder %s420, 0
          %p422 = pneg %p421
          // Predicated region
          $region238: #{char_embeddings_forward.1} parent=225 // pred_check
            _
          $region239: #{char_embeddings_forward.1} parent=225 // pred_check_branch
            %424 = sbr.rel (%p421) target = $region241
          $region240: #{char_embeddings_forward.1} parent=225 // pred_region
            %s425 = sand.u32 1, 7
            %s426 = ssub.s32 1, %s425
            %s427 = scalar_lea.vmem %s398, %s426
            %s428 = ssub.s32 1, %s425
            %s429 = scalar_lea.vmem %s399, %s428 [#allocation2]
            %s430 = sshllo.u32 0, %s425
            loop: start=0, step=1, limit=1
            $region242: #{char_embeddings_forward.1} parent=240 // loop_pre_header
              _
            $region243: #{char_embeddings_forward.1} parent=240 // loop_header
              %s432 = sphi 0, %s436
              %p433 = scmp.ge.s32.totalorder %s432, 1
              %s437 = sphi %s427, %s427
              %s438 = sphi %s429, %s429
            $region244: #{char_embeddings_forward.1} parent=240 // loop_header_branch
              %435 = sbr.rel (%p433) target = $region248
            $region245: #{char_embeddings_forward.1} parent=240 // loop_body
              %v439 = vld [vmem:[%s437] sm:%s430]
              %440 = vst [vmem:[%s438] sm:%s430] %v439
            $region246: #{char_embeddings_forward.1} parent=240 // loop_footer
              %s436 = sadd.s32 1, %s432
            $region247: #{char_embeddings_forward.1} parent=240 // loop_footer_branch
              %431 = sbr.rel target = $region243
            $region248: #{char_embeddings_forward.1} parent=240 // loop_exit
              _
          $region241: #{char_embeddings_forward.1} parent=225 // pred_fallthru
            _
        $region226: #{char_embeddings_forward.1} parent=11 // pred_fallthru
          _
        // Predicated region
        $region227: #{char_embeddings_forward.1} parent=11 // pred_check
          %p406 = pneg %p402
        $region228: #{char_embeddings_forward.1} parent=11 // pred_check_branch
          %408 = sbr.rel (%p406) target = $region230
        $region229: #{char_embeddings_forward.1} parent=11 // pred_region
          %s409 = sshllo.u32 0, 1
          loop: start=0, step=1, limit=1
          $region231: #{char_embeddings_forward.1} parent=229 // loop_pre_header
            _
          $region232: #{char_embeddings_forward.1} parent=229 // loop_header
            %s411 = sphi 0, %s415
            %p412 = scmp.ge.s32.totalorder %s411, 1
            %s416 = sphi %s398, %s398
            %s417 = sphi %s399, %s399
          $region233: #{char_embeddings_forward.1} parent=229 // loop_header_branch
            %414 = sbr.rel (%p412) target = $region237
          $region234: #{char_embeddings_forward.1} parent=229 // loop_body
            %v418 = vld [vmem:[%s416] sm:%s409]
            %419 = vst [vmem:[%s417] sm:%s409] %v418
          $region235: #{char_embeddings_forward.1} parent=229 // loop_footer
            %s415 = sadd.s32 1, %s411
          $region236: #{char_embeddings_forward.1} parent=229 // loop_footer_branch
            %410 = sbr.rel target = $region232
          $region237: #{char_embeddings_forward.1} parent=229 // loop_exit
            _
        $region230: #{char_embeddings_forward.1} parent=11 // pred_fallthru
          _
        // Predicated region
        $region249: #{char_embeddings_forward.1} parent=11 // pred_check
          _
        $region250: #{char_embeddings_forward.1} parent=11 // pred_check_branch
          %443 = sbr.rel (0) target = $region252
        $region251: #{char_embeddings_forward.1} parent=11 // pred_region
          %444 = vsyncadd %s400, 16
        $region252: #{char_embeddings_forward.1} parent=11 // pred_fallthru
          _
        %s445 = sadd.s32 %s55, 8
        %s446 = sld [smem:[#allocation5 + %s445]]
        %s447 = scalar_lea.vmem %s1, %s446
        %s448 = scalar_lea.vmem [#allocation2], 8
        %s449 = scalar_lea.sflag [#allocation3], 8
        %p451 = scmp.lt.u32.totalorder 1, 8
        %p452 = pneg %p451
        // Predicated region
        $region253: #{char_embeddings_forward.1} parent=11 // pred_check
          _
        $region254: #{char_embeddings_forward.1} parent=11 // pred_check_branch
          %454 = sbr.rel (%p451) target = $region256
        $region255: #{char_embeddings_forward.1} parent=11 // pred_region
          %s469 = sand.u32 1, 7
          %p470 = scmp.eq.s32.totalorder %s469, 0
          %p471 = pneg %p470
          // Predicated region
          $region268: #{char_embeddings_forward.1} parent=255 // pred_check
            _
          $region269: #{char_embeddings_forward.1} parent=255 // pred_check_branch
            %473 = sbr.rel (%p470) target = $region271
          $region270: #{char_embeddings_forward.1} parent=255 // pred_region
            %s474 = sand.u32 1, 7
            %s475 = ssub.s32 1, %s474
            %s476 = scalar_lea.vmem %s447, %s475
            %s477 = ssub.s32 1, %s474
            %s478 = scalar_lea.vmem %s448, %s477 [#allocation2]
            %s479 = sshllo.u32 0, %s474
            loop: start=0, step=1, limit=1
            $region272: #{char_embeddings_forward.1} parent=270 // loop_pre_header
              _
            $region273: #{char_embeddings_forward.1} parent=270 // loop_header
              %s481 = sphi 0, %s485
              %p482 = scmp.ge.s32.totalorder %s481, 1
              %s486 = sphi %s476, %s476
              %s487 = sphi %s478, %s478
            $region274: #{char_embeddings_forward.1} parent=270 // loop_header_branch
              %484 = sbr.rel (%p482) target = $region278
            $region275: #{char_embeddings_forward.1} parent=270 // loop_body
              %v488 = vld [vmem:[%s486] sm:%s479]
              %489 = vst [vmem:[%s487] sm:%s479] %v488
            $region276: #{char_embeddings_forward.1} parent=270 // loop_footer
              %s485 = sadd.s32 1, %s481
            $region277: #{char_embeddings_forward.1} parent=270 // loop_footer_branch
              %480 = sbr.rel target = $region273
            $region278: #{char_embeddings_forward.1} parent=270 // loop_exit
              _
          $region271: #{char_embeddings_forward.1} parent=255 // pred_fallthru
            _
        $region256: #{char_embeddings_forward.1} parent=11 // pred_fallthru
          _
        // Predicated region
        $region257: #{char_embeddings_forward.1} parent=11 // pred_check
          %p455 = pneg %p451
        $region258: #{char_embeddings_forward.1} parent=11 // pred_check_branch
          %457 = sbr.rel (%p455) target = $region260
        $region259: #{char_embeddings_forward.1} parent=11 // pred_region
          %s458 = sshllo.u32 0, 1
          loop: start=0, step=1, limit=1
          $region261: #{char_embeddings_forward.1} parent=259 // loop_pre_header
            _
          $region262: #{char_embeddings_forward.1} parent=259 // loop_header
            %s460 = sphi 0, %s464
            %p461 = scmp.ge.s32.totalorder %s460, 1
            %s465 = sphi %s447, %s447
            %s466 = sphi %s448, %s448
          $region263: #{char_embeddings_forward.1} parent=259 // loop_header_branch
            %463 = sbr.rel (%p461) target = $region267
          $region264: #{char_embeddings_forward.1} parent=259 // loop_body
            %v467 = vld [vmem:[%s465] sm:%s458]
            %468 = vst [vmem:[%s466] sm:%s458] %v467
          $region265: #{char_embeddings_forward.1} parent=259 // loop_footer
            %s464 = sadd.s32 1, %s460
          $region266: #{char_embeddings_forward.1} parent=259 // loop_footer_branch
            %459 = sbr.rel target = $region262
          $region267: #{char_embeddings_forward.1} parent=259 // loop_exit
            _
        $region260: #{char_embeddings_forward.1} parent=11 // pred_fallthru
          _
        // Predicated region
        $region279: #{char_embeddings_forward.1} parent=11 // pred_check
          _
        $region280: #{char_embeddings_forward.1} parent=11 // pred_check_branch
          %492 = sbr.rel (0) target = $region282
        $region281: #{char_embeddings_forward.1} parent=11 // pred_region
          %493 = vsyncadd %s449, 16
        $region282: #{char_embeddings_forward.1} parent=11 // pred_fallthru
          _
        %s494 = sadd.s32 %s55, 9
        %s495 = sld [smem:[#allocation5 + %s494]]
        %s496 = scalar_lea.vmem %s1, %s495
        %s497 = scalar_lea.vmem [#allocation2], 9
        %s498 = scalar_lea.sflag [#allocation3], 9
        %p500 = scmp.lt.u32.totalorder 1, 8
        %p501 = pneg %p500
        // Predicated region
        $region283: #{char_embeddings_forward.1} parent=11 // pred_check
          _
        $region284: #{char_embeddings_forward.1} parent=11 // pred_check_branch
          %503 = sbr.rel (%p500) target = $region286
        $region285: #{char_embeddings_forward.1} parent=11 // pred_region
          %s518 = sand.u32 1, 7
          %p519 = scmp.eq.s32.totalorder %s518, 0
          %p520 = pneg %p519
          // Predicated region
          $region298: #{char_embeddings_forward.1} parent=285 // pred_check
            _
          $region299: #{char_embeddings_forward.1} parent=285 // pred_check_branch
            %522 = sbr.rel (%p519) target = $region301
          $region300: #{char_embeddings_forward.1} parent=285 // pred_region
            %s523 = sand.u32 1, 7
            %s524 = ssub.s32 1, %s523
            %s525 = scalar_lea.vmem %s496, %s524
            %s526 = ssub.s32 1, %s523
            %s527 = scalar_lea.vmem %s497, %s526 [#allocation2]
            %s528 = sshllo.u32 0, %s523
            loop: start=0, step=1, limit=1
            $region302: #{char_embeddings_forward.1} parent=300 // loop_pre_header
              _
            $region303: #{char_embeddings_forward.1} parent=300 // loop_header
              %s530 = sphi 0, %s534
              %p531 = scmp.ge.s32.totalorder %s530, 1
              %s535 = sphi %s525, %s525
              %s536 = sphi %s527, %s527
            $region304: #{char_embeddings_forward.1} parent=300 // loop_header_branch
              %533 = sbr.rel (%p531) target = $region308
            $region305: #{char_embeddings_forward.1} parent=300 // loop_body
              %v537 = vld [vmem:[%s535] sm:%s528]
              %538 = vst [vmem:[%s536] sm:%s528] %v537
            $region306: #{char_embeddings_forward.1} parent=300 // loop_footer
              %s534 = sadd.s32 1, %s530
            $region307: #{char_embeddings_forward.1} parent=300 // loop_footer_branch
              %529 = sbr.rel target = $region303
            $region308: #{char_embeddings_forward.1} parent=300 // loop_exit
              _
          $region301: #{char_embeddings_forward.1} parent=285 // pred_fallthru
            _
        $region286: #{char_embeddings_forward.1} parent=11 // pred_fallthru
          _
        // Predicated region
        $region287: #{char_embeddings_forward.1} parent=11 // pred_check
          %p504 = pneg %p500
        $region288: #{char_embeddings_forward.1} parent=11 // pred_check_branch
          %506 = sbr.rel (%p504) target = $region290
        $region289: #{char_embeddings_forward.1} parent=11 // pred_region
          %s507 = sshllo.u32 0, 1
          loop: start=0, step=1, limit=1
          $region291: #{char_embeddings_forward.1} parent=289 // loop_pre_header
            _
          $region292: #{char_embeddings_forward.1} parent=289 // loop_header
            %s509 = sphi 0, %s513
            %p510 = scmp.ge.s32.totalorder %s509, 1
            %s514 = sphi %s496, %s496
            %s515 = sphi %s497, %s497
          $region293: #{char_embeddings_forward.1} parent=289 // loop_header_branch
            %512 = sbr.rel (%p510) target = $region297
          $region294: #{char_embeddings_forward.1} parent=289 // loop_body
            %v516 = vld [vmem:[%s514] sm:%s507]
            %517 = vst [vmem:[%s515] sm:%s507] %v516
          $region295: #{char_embeddings_forward.1} parent=289 // loop_footer
            %s513 = sadd.s32 1, %s509
          $region296: #{char_embeddings_forward.1} parent=289 // loop_footer_branch
            %508 = sbr.rel target = $region292
          $region297: #{char_embeddings_forward.1} parent=289 // loop_exit
            _
        $region290: #{char_embeddings_forward.1} parent=11 // pred_fallthru
          _
        // Predicated region
        $region309: #{char_embeddings_forward.1} parent=11 // pred_check
          _
        $region310: #{char_embeddings_forward.1} parent=11 // pred_check_branch
          %541 = sbr.rel (0) target = $region312
        $region311: #{char_embeddings_forward.1} parent=11 // pred_region
          %542 = vsyncadd %s498, 16
        $region312: #{char_embeddings_forward.1} parent=11 // pred_fallthru
          _
        %s543 = sadd.s32 %s55, 10
        %s544 = sld [smem:[#allocation5 + %s543]]
        %s545 = scalar_lea.vmem %s1, %s544
        %s546 = scalar_lea.vmem [#allocation2], 10
        %s547 = scalar_lea.sflag [#allocation3], 10
        %p549 = scmp.lt.u32.totalorder 1, 8
        %p550 = pneg %p549
        // Predicated region
        $region313: #{char_embeddings_forward.1} parent=11 // pred_check
          _
        $region314: #{char_embeddings_forward.1} parent=11 // pred_check_branch
          %552 = sbr.rel (%p549) target = $region316
        $region315: #{char_embeddings_forward.1} parent=11 // pred_region
          %s567 = sand.u32 1, 7
          %p568 = scmp.eq.s32.totalorder %s567, 0
          %p569 = pneg %p568
          // Predicated region
          $region328: #{char_embeddings_forward.1} parent=315 // pred_check
            _
          $region329: #{char_embeddings_forward.1} parent=315 // pred_check_branch
            %571 = sbr.rel (%p568) target = $region331
          $region330: #{char_embeddings_forward.1} parent=315 // pred_region
            %s572 = sand.u32 1, 7
            %s573 = ssub.s32 1, %s572
            %s574 = scalar_lea.vmem %s545, %s573
            %s575 = ssub.s32 1, %s572
            %s576 = scalar_lea.vmem %s546, %s575 [#allocation2]
            %s577 = sshllo.u32 0, %s572
            loop: start=0, step=1, limit=1
            $region332: #{char_embeddings_forward.1} parent=330 // loop_pre_header
              _
            $region333: #{char_embeddings_forward.1} parent=330 // loop_header
              %s579 = sphi 0, %s583
              %p580 = scmp.ge.s32.totalorder %s579, 1
              %s584 = sphi %s574, %s574
              %s585 = sphi %s576, %s576
            $region334: #{char_embeddings_forward.1} parent=330 // loop_header_branch
              %582 = sbr.rel (%p580) target = $region338
            $region335: #{char_embeddings_forward.1} parent=330 // loop_body
              %v586 = vld [vmem:[%s584] sm:%s577]
              %587 = vst [vmem:[%s585] sm:%s577] %v586
            $region336: #{char_embeddings_forward.1} parent=330 // loop_footer
              %s583 = sadd.s32 1, %s579
            $region337: #{char_embeddings_forward.1} parent=330 // loop_footer_branch
              %578 = sbr.rel target = $region333
            $region338: #{char_embeddings_forward.1} parent=330 // loop_exit
              _
          $region331: #{char_embeddings_forward.1} parent=315 // pred_fallthru
            _
        $region316: #{char_embeddings_forward.1} parent=11 // pred_fallthru
          _
        // Predicated region
        $region317: #{char_embeddings_forward.1} parent=11 // pred_check
          %p553 = pneg %p549
        $region318: #{char_embeddings_forward.1} parent=11 // pred_check_branch
          %555 = sbr.rel (%p553) target = $region320
        $region319: #{char_embeddings_forward.1} parent=11 // pred_region
          %s556 = sshllo.u32 0, 1
          loop: start=0, step=1, limit=1
          $region321: #{char_embeddings_forward.1} parent=319 // loop_pre_header
            _
          $region322: #{char_embeddings_forward.1} parent=319 // loop_header
            %s558 = sphi 0, %s562
            %p559 = scmp.ge.s32.totalorder %s558, 1
            %s563 = sphi %s545, %s545
            %s564 = sphi %s546, %s546
          $region323: #{char_embeddings_forward.1} parent=319 // loop_header_branch
            %561 = sbr.rel (%p559) target = $region327
          $region324: #{char_embeddings_forward.1} parent=319 // loop_body
            %v565 = vld [vmem:[%s563] sm:%s556]
            %566 = vst [vmem:[%s564] sm:%s556] %v565
          $region325: #{char_embeddings_forward.1} parent=319 // loop_footer
            %s562 = sadd.s32 1, %s558
          $region326: #{char_embeddings_forward.1} parent=319 // loop_footer_branch
            %557 = sbr.rel target = $region322
          $region327: #{char_embeddings_forward.1} parent=319 // loop_exit
            _
        $region320: #{char_embeddings_forward.1} parent=11 // pred_fallthru
          _
        // Predicated region
        $region339: #{char_embeddings_forward.1} parent=11 // pred_check
          _
        $region340: #{char_embeddings_forward.1} parent=11 // pred_check_branch
          %590 = sbr.rel (0) target = $region342
        $region341: #{char_embeddings_forward.1} parent=11 // pred_region
          %591 = vsyncadd %s547, 16
        $region342: #{char_embeddings_forward.1} parent=11 // pred_fallthru
          _
        %s592 = sadd.s32 %s55, 11
        %s593 = sld [smem:[#allocation5 + %s592]]
        %s594 = scalar_lea.vmem %s1, %s593
        %s595 = scalar_lea.vmem [#allocation2], 11
        %s596 = scalar_lea.sflag [#allocation3], 11
        %p598 = scmp.lt.u32.totalorder 1, 8
        %p599 = pneg %p598
        // Predicated region
        $region343: #{char_embeddings_forward.1} parent=11 // pred_check
          _
        $region344: #{char_embeddings_forward.1} parent=11 // pred_check_branch
          %601 = sbr.rel (%p598) target = $region346
        $region345: #{char_embeddings_forward.1} parent=11 // pred_region
          %s616 = sand.u32 1, 7
          %p617 = scmp.eq.s32.totalorder %s616, 0
          %p618 = pneg %p617
          // Predicated region
          $region358: #{char_embeddings_forward.1} parent=345 // pred_check
            _
          $region359: #{char_embeddings_forward.1} parent=345 // pred_check_branch
            %620 = sbr.rel (%p617) target = $region361
          $region360: #{char_embeddings_forward.1} parent=345 // pred_region
            %s621 = sand.u32 1, 7
            %s622 = ssub.s32 1, %s621
            %s623 = scalar_lea.vmem %s594, %s622
            %s624 = ssub.s32 1, %s621
            %s625 = scalar_lea.vmem %s595, %s624 [#allocation2]
            %s626 = sshllo.u32 0, %s621
            loop: start=0, step=1, limit=1
            $region362: #{char_embeddings_forward.1} parent=360 // loop_pre_header
              _
            $region363: #{char_embeddings_forward.1} parent=360 // loop_header
              %s628 = sphi 0, %s632
              %p629 = scmp.ge.s32.totalorder %s628, 1
              %s633 = sphi %s623, %s623
              %s634 = sphi %s625, %s625
            $region364: #{char_embeddings_forward.1} parent=360 // loop_header_branch
              %631 = sbr.rel (%p629) target = $region368
            $region365: #{char_embeddings_forward.1} parent=360 // loop_body
              %v635 = vld [vmem:[%s633] sm:%s626]
              %636 = vst [vmem:[%s634] sm:%s626] %v635
            $region366: #{char_embeddings_forward.1} parent=360 // loop_footer
              %s632 = sadd.s32 1, %s628
            $region367: #{char_embeddings_forward.1} parent=360 // loop_footer_branch
              %627 = sbr.rel target = $region363
            $region368: #{char_embeddings_forward.1} parent=360 // loop_exit
              _
          $region361: #{char_embeddings_forward.1} parent=345 // pred_fallthru
            _
        $region346: #{char_embeddings_forward.1} parent=11 // pred_fallthru
          _
        // Predicated region
        $region347: #{char_embeddings_forward.1} parent=11 // pred_check
          %p602 = pneg %p598
        $region348: #{char_embeddings_forward.1} parent=11 // pred_check_branch
          %604 = sbr.rel (%p602) target = $region350
        $region349: #{char_embeddings_forward.1} parent=11 // pred_region
          %s605 = sshllo.u32 0, 1
          loop: start=0, step=1, limit=1
          $region351: #{char_embeddings_forward.1} parent=349 // loop_pre_header
            _
          $region352: #{char_embeddings_forward.1} parent=349 // loop_header
            %s607 = sphi 0, %s611
            %p608 = scmp.ge.s32.totalorder %s607, 1
            %s612 = sphi %s594, %s594
            %s613 = sphi %s595, %s595
          $region353: #{char_embeddings_forward.1} parent=349 // loop_header_branch
            %610 = sbr.rel (%p608) target = $region357
          $region354: #{char_embeddings_forward.1} parent=349 // loop_body
            %v614 = vld [vmem:[%s612] sm:%s605]
            %615 = vst [vmem:[%s613] sm:%s605] %v614
          $region355: #{char_embeddings_forward.1} parent=349 // loop_footer
            %s611 = sadd.s32 1, %s607
          $region356: #{char_embeddings_forward.1} parent=349 // loop_footer_branch
            %606 = sbr.rel target = $region352
          $region357: #{char_embeddings_forward.1} parent=349 // loop_exit
            _
        $region350: #{char_embeddings_forward.1} parent=11 // pred_fallthru
          _
        // Predicated region
        $region369: #{char_embeddings_forward.1} parent=11 // pred_check
          _
        $region370: #{char_embeddings_forward.1} parent=11 // pred_check_branch
          %639 = sbr.rel (0) target = $region372
        $region371: #{char_embeddings_forward.1} parent=11 // pred_region
          %640 = vsyncadd %s596, 16
        $region372: #{char_embeddings_forward.1} parent=11 // pred_fallthru
          _
        %s641 = sadd.s32 %s55, 12
        %s642 = sld [smem:[#allocation5 + %s641]]
        %s643 = scalar_lea.vmem %s1, %s642
        %s644 = scalar_lea.vmem [#allocation2], 12
        %s645 = scalar_lea.sflag [#allocation3], 12
        %p647 = scmp.lt.u32.totalorder 1, 8
        %p648 = pneg %p647
        // Predicated region
        $region373: #{char_embeddings_forward.1} parent=11 // pred_check
          _
        $region374: #{char_embeddings_forward.1} parent=11 // pred_check_branch
          %650 = sbr.rel (%p647) target = $region376
        $region375: #{char_embeddings_forward.1} parent=11 // pred_region
          %s665 = sand.u32 1, 7
          %p666 = scmp.eq.s32.totalorder %s665, 0
          %p667 = pneg %p666
          // Predicated region
          $region388: #{char_embeddings_forward.1} parent=375 // pred_check
            _
          $region389: #{char_embeddings_forward.1} parent=375 // pred_check_branch
            %669 = sbr.rel (%p666) target = $region391
          $region390: #{char_embeddings_forward.1} parent=375 // pred_region
            %s670 = sand.u32 1, 7
            %s671 = ssub.s32 1, %s670
            %s672 = scalar_lea.vmem %s643, %s671
            %s673 = ssub.s32 1, %s670
            %s674 = scalar_lea.vmem %s644, %s673 [#allocation2]
            %s675 = sshllo.u32 0, %s670
            loop: start=0, step=1, limit=1
            $region392: #{char_embeddings_forward.1} parent=390 // loop_pre_header
              _
            $region393: #{char_embeddings_forward.1} parent=390 // loop_header
              %s677 = sphi 0, %s681
              %p678 = scmp.ge.s32.totalorder %s677, 1
              %s682 = sphi %s672, %s672
              %s683 = sphi %s674, %s674
            $region394: #{char_embeddings_forward.1} parent=390 // loop_header_branch
              %680 = sbr.rel (%p678) target = $region398
            $region395: #{char_embeddings_forward.1} parent=390 // loop_body
              %v684 = vld [vmem:[%s682] sm:%s675]
              %685 = vst [vmem:[%s683] sm:%s675] %v684
            $region396: #{char_embeddings_forward.1} parent=390 // loop_footer
              %s681 = sadd.s32 1, %s677
            $region397: #{char_embeddings_forward.1} parent=390 // loop_footer_branch
              %676 = sbr.rel target = $region393
            $region398: #{char_embeddings_forward.1} parent=390 // loop_exit
              _
          $region391: #{char_embeddings_forward.1} parent=375 // pred_fallthru
            _
        $region376: #{char_embeddings_forward.1} parent=11 // pred_fallthru
          _
        // Predicated region
        $region377: #{char_embeddings_forward.1} parent=11 // pred_check
          %p651 = pneg %p647
        $region378: #{char_embeddings_forward.1} parent=11 // pred_check_branch
          %653 = sbr.rel (%p651) target = $region380
        $region379: #{char_embeddings_forward.1} parent=11 // pred_region
          %s654 = sshllo.u32 0, 1
          loop: start=0, step=1, limit=1
          $region381: #{char_embeddings_forward.1} parent=379 // loop_pre_header
            _
          $region382: #{char_embeddings_forward.1} parent=379 // loop_header
            %s656 = sphi 0, %s660
            %p657 = scmp.ge.s32.totalorder %s656, 1
            %s661 = sphi %s643, %s643
            %s662 = sphi %s644, %s644
          $region383: #{char_embeddings_forward.1} parent=379 // loop_header_branch
            %659 = sbr.rel (%p657) target = $region387
          $region384: #{char_embeddings_forward.1} parent=379 // loop_body
            %v663 = vld [vmem:[%s661] sm:%s654]
            %664 = vst [vmem:[%s662] sm:%s654] %v663
          $region385: #{char_embeddings_forward.1} parent=379 // loop_footer
            %s660 = sadd.s32 1, %s656
          $region386: #{char_embeddings_forward.1} parent=379 // loop_footer_branch
            %655 = sbr.rel target = $region382
          $region387: #{char_embeddings_forward.1} parent=379 // loop_exit
            _
        $region380: #{char_embeddings_forward.1} parent=11 // pred_fallthru
          _
        // Predicated region
        $region399: #{char_embeddings_forward.1} parent=11 // pred_check
          _
        $region400: #{char_embeddings_forward.1} parent=11 // pred_check_branch
          %688 = sbr.rel (0) target = $region402
        $region401: #{char_embeddings_forward.1} parent=11 // pred_region
          %689 = vsyncadd %s645, 16
        $region402: #{char_embeddings_forward.1} parent=11 // pred_fallthru
          _
        %s690 = sadd.s32 %s55, 13
        %s691 = sld [smem:[#allocation5 + %s690]]
        %s692 = scalar_lea.vmem %s1, %s691
        %s693 = scalar_lea.vmem [#allocation2], 13
        %s694 = scalar_lea.sflag [#allocation3], 13
        %p696 = scmp.lt.u32.totalorder 1, 8
        %p697 = pneg %p696
        // Predicated region
        $region403: #{char_embeddings_forward.1} parent=11 // pred_check
          _
        $region404: #{char_embeddings_forward.1} parent=11 // pred_check_branch
          %699 = sbr.rel (%p696) target = $region406
        $region405: #{char_embeddings_forward.1} parent=11 // pred_region
          %s714 = sand.u32 1, 7
          %p715 = scmp.eq.s32.totalorder %s714, 0
          %p716 = pneg %p715
          // Predicated region
          $region418: #{char_embeddings_forward.1} parent=405 // pred_check
            _
          $region419: #{char_embeddings_forward.1} parent=405 // pred_check_branch
            %718 = sbr.rel (%p715) target = $region421
          $region420: #{char_embeddings_forward.1} parent=405 // pred_region
            %s719 = sand.u32 1, 7
            %s720 = ssub.s32 1, %s719
            %s721 = scalar_lea.vmem %s692, %s720
            %s722 = ssub.s32 1, %s719
            %s723 = scalar_lea.vmem %s693, %s722 [#allocation2]
            %s724 = sshllo.u32 0, %s719
            loop: start=0, step=1, limit=1
            $region422: #{char_embeddings_forward.1} parent=420 // loop_pre_header
              _
            $region423: #{char_embeddings_forward.1} parent=420 // loop_header
              %s726 = sphi 0, %s730
              %p727 = scmp.ge.s32.totalorder %s726, 1
              %s731 = sphi %s721, %s721
              %s732 = sphi %s723, %s723
            $region424: #{char_embeddings_forward.1} parent=420 // loop_header_branch
              %729 = sbr.rel (%p727) target = $region428
            $region425: #{char_embeddings_forward.1} parent=420 // loop_body
              %v733 = vld [vmem:[%s731] sm:%s724]
              %734 = vst [vmem:[%s732] sm:%s724] %v733
            $region426: #{char_embeddings_forward.1} parent=420 // loop_footer
              %s730 = sadd.s32 1, %s726
            $region427: #{char_embeddings_forward.1} parent=420 // loop_footer_branch
              %725 = sbr.rel target = $region423
            $region428: #{char_embeddings_forward.1} parent=420 // loop_exit
              _
          $region421: #{char_embeddings_forward.1} parent=405 // pred_fallthru
            _
        $region406: #{char_embeddings_forward.1} parent=11 // pred_fallthru
          _
        // Predicated region
        $region407: #{char_embeddings_forward.1} parent=11 // pred_check
          %p700 = pneg %p696
        $region408: #{char_embeddings_forward.1} parent=11 // pred_check_branch
          %702 = sbr.rel (%p700) target = $region410
        $region409: #{char_embeddings_forward.1} parent=11 // pred_region
          %s703 = sshllo.u32 0, 1
          loop: start=0, step=1, limit=1
          $region411: #{char_embeddings_forward.1} parent=409 // loop_pre_header
            _
          $region412: #{char_embeddings_forward.1} parent=409 // loop_header
            %s705 = sphi 0, %s709
            %p706 = scmp.ge.s32.totalorder %s705, 1
            %s710 = sphi %s692, %s692
            %s711 = sphi %s693, %s693
          $region413: #{char_embeddings_forward.1} parent=409 // loop_header_branch
            %708 = sbr.rel (%p706) target = $region417
          $region414: #{char_embeddings_forward.1} parent=409 // loop_body
            %v712 = vld [vmem:[%s710] sm:%s703]
            %713 = vst [vmem:[%s711] sm:%s703] %v712
          $region415: #{char_embeddings_forward.1} parent=409 // loop_footer
            %s709 = sadd.s32 1, %s705
          $region416: #{char_embeddings_forward.1} parent=409 // loop_footer_branch
            %704 = sbr.rel target = $region412
          $region417: #{char_embeddings_forward.1} parent=409 // loop_exit
            _
        $region410: #{char_embeddings_forward.1} parent=11 // pred_fallthru
          _
        // Predicated region
        $region429: #{char_embeddings_forward.1} parent=11 // pred_check
          _
        $region430: #{char_embeddings_forward.1} parent=11 // pred_check_branch
          %737 = sbr.rel (0) target = $region432
        $region431: #{char_embeddings_forward.1} parent=11 // pred_region
          %738 = vsyncadd %s694, 16
        $region432: #{char_embeddings_forward.1} parent=11 // pred_fallthru
          _
        %s739 = sadd.s32 %s55, 14
        %s740 = sld [smem:[#allocation5 + %s739]]
        %s741 = scalar_lea.vmem %s1, %s740
        %s742 = scalar_lea.vmem [#allocation2], 14
        %s743 = scalar_lea.sflag [#allocation3], 14
        %p745 = scmp.lt.u32.totalorder 1, 8
        %p746 = pneg %p745
        // Predicated region
        $region433: #{char_embeddings_forward.1} parent=11 // pred_check
          _
        $region434: #{char_embeddings_forward.1} parent=11 // pred_check_branch
          %748 = sbr.rel (%p745) target = $region436
        $region435: #{char_embeddings_forward.1} parent=11 // pred_region
          %s763 = sand.u32 1, 7
          %p764 = scmp.eq.s32.totalorder %s763, 0
          %p765 = pneg %p764
          // Predicated region
          $region448: #{char_embeddings_forward.1} parent=435 // pred_check
            _
          $region449: #{char_embeddings_forward.1} parent=435 // pred_check_branch
            %767 = sbr.rel (%p764) target = $region451
          $region450: #{char_embeddings_forward.1} parent=435 // pred_region
            %s768 = sand.u32 1, 7
            %s769 = ssub.s32 1, %s768
            %s770 = scalar_lea.vmem %s741, %s769
            %s771 = ssub.s32 1, %s768
            %s772 = scalar_lea.vmem %s742, %s771 [#allocation2]
            %s773 = sshllo.u32 0, %s768
            loop: start=0, step=1, limit=1
            $region452: #{char_embeddings_forward.1} parent=450 // loop_pre_header
              _
            $region453: #{char_embeddings_forward.1} parent=450 // loop_header
              %s775 = sphi 0, %s779
              %p776 = scmp.ge.s32.totalorder %s775, 1
              %s780 = sphi %s770, %s770
              %s781 = sphi %s772, %s772
            $region454: #{char_embeddings_forward.1} parent=450 // loop_header_branch
              %778 = sbr.rel (%p776) target = $region458
            $region455: #{char_embeddings_forward.1} parent=450 // loop_body
              %v782 = vld [vmem:[%s780] sm:%s773]
              %783 = vst [vmem:[%s781] sm:%s773] %v782
            $region456: #{char_embeddings_forward.1} parent=450 // loop_footer
              %s779 = sadd.s32 1, %s775
            $region457: #{char_embeddings_forward.1} parent=450 // loop_footer_branch
              %774 = sbr.rel target = $region453
            $region458: #{char_embeddings_forward.1} parent=450 // loop_exit
              _
          $region451: #{char_embeddings_forward.1} parent=435 // pred_fallthru
            _
        $region436: #{char_embeddings_forward.1} parent=11 // pred_fallthru
          _
        // Predicated region
        $region437: #{char_embeddings_forward.1} parent=11 // pred_check
          %p749 = pneg %p745
        $region438: #{char_embeddings_forward.1} parent=11 // pred_check_branch
          %751 = sbr.rel (%p749) target = $region440
        $region439: #{char_embeddings_forward.1} parent=11 // pred_region
          %s752 = sshllo.u32 0, 1
          loop: start=0, step=1, limit=1
          $region441: #{char_embeddings_forward.1} parent=439 // loop_pre_header
            _
          $region442: #{char_embeddings_forward.1} parent=439 // loop_header
            %s754 = sphi 0, %s758
            %p755 = scmp.ge.s32.totalorder %s754, 1
            %s759 = sphi %s741, %s741
            %s760 = sphi %s742, %s742
          $region443: #{char_embeddings_forward.1} parent=439 // loop_header_branch
            %757 = sbr.rel (%p755) target = $region447
          $region444: #{char_embeddings_forward.1} parent=439 // loop_body
            %v761 = vld [vmem:[%s759] sm:%s752]
            %762 = vst [vmem:[%s760] sm:%s752] %v761
          $region445: #{char_embeddings_forward.1} parent=439 // loop_footer
            %s758 = sadd.s32 1, %s754
          $region446: #{char_embeddings_forward.1} parent=439 // loop_footer_branch
            %753 = sbr.rel target = $region442
          $region447: #{char_embeddings_forward.1} parent=439 // loop_exit
            _
        $region440: #{char_embeddings_forward.1} parent=11 // pred_fallthru
          _
        // Predicated region
        $region459: #{char_embeddings_forward.1} parent=11 // pred_check
          _
        $region460: #{char_embeddings_forward.1} parent=11 // pred_check_branch
          %786 = sbr.rel (0) target = $region462
        $region461: #{char_embeddings_forward.1} parent=11 // pred_region
          %787 = vsyncadd %s743, 16
        $region462: #{char_embeddings_forward.1} parent=11 // pred_fallthru
          _
        %s788 = sadd.s32 %s55, 15
        %s789 = sld [smem:[#allocation5 + %s788]]
        %s790 = scalar_lea.vmem %s1, %s789
        %s791 = scalar_lea.vmem [#allocation2], 15
        %s792 = scalar_lea.sflag [#allocation3], 15
        %p794 = scmp.lt.u32.totalorder 1, 8
        %p795 = pneg %p794
        // Predicated region
        $region463: #{char_embeddings_forward.1} parent=11 // pred_check
          _
        $region464: #{char_embeddings_forward.1} parent=11 // pred_check_branch
          %797 = sbr.rel (%p794) target = $region466
        $region465: #{char_embeddings_forward.1} parent=11 // pred_region
          %s812 = sand.u32 1, 7
          %p813 = scmp.eq.s32.totalorder %s812, 0
          %p814 = pneg %p813
          // Predicated region
          $region478: #{char_embeddings_forward.1} parent=465 // pred_check
            _
          $region479: #{char_embeddings_forward.1} parent=465 // pred_check_branch
            %816 = sbr.rel (%p813) target = $region481
          $region480: #{char_embeddings_forward.1} parent=465 // pred_region
            %s817 = sand.u32 1, 7
            %s818 = ssub.s32 1, %s817
            %s819 = scalar_lea.vmem %s790, %s818
            %s820 = ssub.s32 1, %s817
            %s821 = scalar_lea.vmem %s791, %s820 [#allocation2]
            %s822 = sshllo.u32 0, %s817
            loop: start=0, step=1, limit=1
            $region482: #{char_embeddings_forward.1} parent=480 // loop_pre_header
              _
            $region483: #{char_embeddings_forward.1} parent=480 // loop_header
              %s824 = sphi 0, %s828
              %p825 = scmp.ge.s32.totalorder %s824, 1
              %s829 = sphi %s819, %s819
              %s830 = sphi %s821, %s821
            $region484: #{char_embeddings_forward.1} parent=480 // loop_header_branch
              %827 = sbr.rel (%p825) target = $region488
            $region485: #{char_embeddings_forward.1} parent=480 // loop_body
              %v831 = vld [vmem:[%s829] sm:%s822]
              %832 = vst [vmem:[%s830] sm:%s822] %v831
            $region486: #{char_embeddings_forward.1} parent=480 // loop_footer
              %s828 = sadd.s32 1, %s824
            $region487: #{char_embeddings_forward.1} parent=480 // loop_footer_branch
              %823 = sbr.rel target = $region483
            $region488: #{char_embeddings_forward.1} parent=480 // loop_exit
              _
          $region481: #{char_embeddings_forward.1} parent=465 // pred_fallthru
            _
        $region466: #{char_embeddings_forward.1} parent=11 // pred_fallthru
          _
        // Predicated region
        $region467: #{char_embeddings_forward.1} parent=11 // pred_check
          %p798 = pneg %p794
        $region468: #{char_embeddings_forward.1} parent=11 // pred_check_branch
          %800 = sbr.rel (%p798) target = $region470
        $region469: #{char_embeddings_forward.1} parent=11 // pred_region
          %s801 = sshllo.u32 0, 1
          loop: start=0, step=1, limit=1
          $region471: #{char_embeddings_forward.1} parent=469 // loop_pre_header
            _
          $region472: #{char_embeddings_forward.1} parent=469 // loop_header
            %s803 = sphi 0, %s807
            %p804 = scmp.ge.s32.totalorder %s803, 1
            %s808 = sphi %s790, %s790
            %s809 = sphi %s791, %s791
          $region473: #{char_embeddings_forward.1} parent=469 // loop_header_branch
            %806 = sbr.rel (%p804) target = $region477
          $region474: #{char_embeddings_forward.1} parent=469 // loop_body
            %v810 = vld [vmem:[%s808] sm:%s801]
            %811 = vst [vmem:[%s809] sm:%s801] %v810
          $region475: #{char_embeddings_forward.1} parent=469 // loop_footer
            %s807 = sadd.s32 1, %s803
          $region476: #{char_embeddings_forward.1} parent=469 // loop_footer_branch
            %802 = sbr.rel target = $region472
          $region477: #{char_embeddings_forward.1} parent=469 // loop_exit
            _
        $region470: #{char_embeddings_forward.1} parent=11 // pred_fallthru
          _
        // Predicated region
        $region489: #{char_embeddings_forward.1} parent=11 // pred_check
          _
        $region490: #{char_embeddings_forward.1} parent=11 // pred_check_branch
          %835 = sbr.rel (0) target = $region492
        $region491: #{char_embeddings_forward.1} parent=11 // pred_region
          %836 = vsyncadd %s792, 16
        $region492: #{char_embeddings_forward.1} parent=11 // pred_fallthru
          _
        %s837 = smul.u32 1, 1
        %s838 = sshll.u32 %s837, 4
        %839 = dma.done [#allocation3], %s838
        %s840 = sshll.u32 %s837, 4
        %841 = dma.done %s106, %s840
        %s842 = sshll.u32 %s837, 4
        %843 = dma.done %s155, %s842
        %s844 = sshll.u32 %s837, 4
        %845 = dma.done %s204, %s844
        %s846 = sshll.u32 %s837, 4
        %847 = dma.done %s253, %s846
        %s848 = sshll.u32 %s837, 4
        %849 = dma.done %s302, %s848
        %s850 = sshll.u32 %s837, 4
        %851 = dma.done %s351, %s850
        %s852 = sshll.u32 %s837, 4
        %853 = dma.done %s400, %s852
        %s854 = sshll.u32 %s837, 4
        %855 = dma.done %s449, %s854
        %s856 = sshll.u32 %s837, 4
        %857 = dma.done %s498, %s856
        %s858 = sshll.u32 %s837, 4
        %859 = dma.done %s547, %s858
        %s860 = sshll.u32 %s837, 4
        %861 = dma.done %s596, %s860
        %s862 = sshll.u32 %s837, 4
        %863 = dma.done %s645, %s862
        %s864 = sshll.u32 %s837, 4
        %865 = dma.done %s694, %s864
        %s866 = sshll.u32 %s837, 4
        %867 = dma.done %s743, %s866
        %s868 = sshll.u32 %s837, 4
        %869 = dma.done %s792, %s868
        %v870 = vld [vmem:[#allocation2] sm:$0xff]
        %v871 = vld [vmem:[#allocation2 + $0x8] sm:$0xff]
        %vm872 = vcmask 261120
        %873 = vst.msk [vmem:[%s53] sm:$0xff] %vm872, %v870
        %874 = vst.msk [vmem:[%s53 + $0x8] sm:$0xff] %vm872, %v871
        %s875 = sand.u32 %s26, 1
        %s876 = scalar_lea.sflag [#allocation7], %s875
        %s877 = sand.u32 %s26, 1
        %s878 = smul.addr %s877, 16
        %s879 = scalar_lea.vmem [#allocation6], %s878
        // Predicated region
        $region493: #{char_embeddings_forward.1} parent=11 // pred_check
          %p880 = pneg %p32
        $region494: #{char_embeddings_forward.1} parent=11 // pred_check_branch
          %882 = sbr.rel (%p880) target = $region496
        $region495: #{char_embeddings_forward.1} parent=11 // pred_region
          %s883 = smul.u32 2, %s17
          %s885 = ssub.s32 256, 256
          %886 = vsyncadd %s876, %s885
          %s887 = smul.addr %s883, 128
          %s888 = scalar_lea.hbm %s2, %s887
          %s889 = sshll.u32 %s879, 4
          %s890 = int_to_ptr.vmem [resolvable:$true] %s889
          %895 = dma.vmem_to_hbm [thread:$0]  %s890, 256, %s888, %s876, 128, 128, 8
        $region496: #{char_embeddings_forward.1} parent=11 // pred_fallthru
          _
      $region12: #{char_embeddings_forward.1} parent=5 // pred_fallthru
        _
      %p896 = scmp.le.s32.totalorder 1, %s17
      // Predicated region
      $region497: #{char_embeddings_forward.1} parent=5 // pred_check
        %p897 = pneg %p896
      $region498: #{char_embeddings_forward.1} parent=5 // pred_check_branch
        %899 = sbr.rel (%p897) target = $region500
      $region499: #{char_embeddings_forward.1} parent=5 // pred_region
        %s900 = ssub.s32 %s17, 1
        // Predicated region
        $region501: #{char_embeddings_forward.1} parent=499 // pred_check
          %p901 = pneg %p38
        $region502: #{char_embeddings_forward.1} parent=499 // pred_check_branch
          %903 = sbr.rel (%p901) target = $region504
        $region503: #{char_embeddings_forward.1} parent=499 // pred_region
          %s904 = sand.u32 %s29, 1
          %s905 = scalar_lea.sflag [#allocation7], %s904
          %s906 = sand.u32 %s29, 1
          %s907 = smul.addr %s906, 16
          %s908 = scalar_lea.vmem [#allocation6], %s907
          %909 = dma.done %s905, 256
        $region504: #{char_embeddings_forward.1} parent=499 // pred_fallthru
          _
      $region500: #{char_embeddings_forward.1} parent=5 // pred_fallthru
        _
    $region6: #{char_embeddings_forward.1} parent=1 // loop_footer
      %s21 = sadd.s32 1, %s17
    $region7: #{char_embeddings_forward.1} parent=1 // loop_footer_branch
      %16 = sbr.rel target = $region3
    $region8: #{char_embeddings_forward.1} parent=1 // loop_exit
      _
    %910 = vsyncpa [#allocation7], 1
    %s911 = scalar_lea.sflag [#allocation7], 1
    %912 = vsyncpa %s911, 1
  %913 = vsyncmov [#allocation3]
  %s914 = vpop.sfrf %913
  %p915 = scmp.eq.s32.totalorder %s914, 0
  %p916 = pneg %p915
  %918 = shalt.err (%p916)
  %s919 = scalar_lea.sflag [#allocation3], 1
  %920 = vsyncmov %s919
  %s921 = vpop.sfrf %920
  %p922 = scmp.eq.s32.totalorder %s921, 0
  %p923 = pneg %p922
  %925 = shalt.err (%p923)
  %s926 = scalar_lea.sflag [#allocation3], 2
  %927 = vsyncmov %s926
  %s928 = vpop.sfrf %927
  %p929 = scmp.eq.s32.totalorder %s928, 0
  %p930 = pneg %p929
  %932 = shalt.err (%p930)
  %s933 = scalar_lea.sflag [#allocation3], 3
  %934 = vsyncmov %s933
  %s935 = vpop.sfrf %934
  %p936 = scmp.eq.s32.totalorder %s935, 0
  %p937 = pneg %p936
  %939 = shalt.err (%p937)
  %s940 = scalar_lea.sflag [#allocation3], 4
  %941 = vsyncmov %s940
  %s942 = vpop.sfrf %941
  %p943 = scmp.eq.s32.totalorder %s942, 0
  %p944 = pneg %p943
  %946 = shalt.err (%p944)
  %s947 = scalar_lea.sflag [#allocation3], 5
  %948 = vsyncmov %s947
  %s949 = vpop.sfrf %948
  %p950 = scmp.eq.s32.totalorder %s949, 0
  %p951 = pneg %p950
  %953 = shalt.err (%p951)
  %s954 = scalar_lea.sflag [#allocation3], 6
  %955 = vsyncmov %s954
  %s956 = vpop.sfrf %955
  %p957 = scmp.eq.s32.totalorder %s956, 0
  %p958 = pneg %p957
  %960 = shalt.err (%p958)
  %s961 = scalar_lea.sflag [#allocation3], 7
  %962 = vsyncmov %s961
  %s963 = vpop.sfrf %962
  %p964 = scmp.eq.s32.totalorder %s963, 0
  %p965 = pneg %p964
  %967 = shalt.err (%p965)
  %s968 = scalar_lea.sflag [#allocation3], 8
  %969 = vsyncmov %s968
  %s970 = vpop.sfrf %969
  %p971 = scmp.eq.s32.totalorder %s970, 0
  %p972 = pneg %p971
  %974 = shalt.err (%p972)
  %s975 = scalar_lea.sflag [#allocation3], 9
  %976 = vsyncmov %s975
  %s977 = vpop.sfrf %976
  %p978 = scmp.eq.s32.totalorder %s977, 0
  %p979 = pneg %p978
  %981 = shalt.err (%p979)
  %s982 = scalar_lea.sflag [#allocation3], 10
  %983 = vsyncmov %s982
  %s984 = vpop.sfrf %983
  %p985 = scmp.eq.s32.totalorder %s984, 0
  %p986 = pneg %p985
  %988 = shalt.err (%p986)
  %s989 = scalar_lea.sflag [#allocation3], 11
  %990 = vsyncmov %s989
  %s991 = vpop.sfrf %990
  %p992 = scmp.eq.s32.totalorder %s991, 0
  %p993 = pneg %p992
  %995 = shalt.err (%p993)
  %s996 = scalar_lea.sflag [#allocation3], 12
  %997 = vsyncmov %s996
  %s998 = vpop.sfrf %997
  %p999 = scmp.eq.s32.totalorder %s998, 0
  %p1000 = pneg %p999
  %1002 = shalt.err (%p1000)
  %s1003 = scalar_lea.sflag [#allocation3], 13
  %1004 = vsyncmov %s1003
  %s1005 = vpop.sfrf %1004
  %p1006 = scmp.eq.s32.totalorder %s1005, 0
  %p1007 = pneg %p1006
  %1009 = shalt.err (%p1007)
  %s1010 = scalar_lea.sflag [#allocation3], 14
  %1011 = vsyncmov %s1010
  %s1012 = vpop.sfrf %1011
  %p1013 = scmp.eq.s32.totalorder %s1012, 0
  %p1014 = pneg %p1013
  %1016 = shalt.err (%p1014)
  %s1017 = scalar_lea.sflag [#allocation3], 15
  %1018 = vsyncmov %s1017
  %s1019 = vpop.sfrf %1018
  %p1020 = scmp.eq.s32.totalorder %s1019, 0
  %p1021 = pneg %p1020
  %1023 = shalt.err (%p1021)

</llo_original>
